<compile_context>
chip_gen: v7x
topology: tpu7x:2x2x1
jax: 0.10.0
libtpu: 0.0.40
codegen_flags: <defaults>
</compile_context>

<pallas_src>
import functools

import jax
import jax.numpy as jnp
from jax.experimental import pallas as pl
from jax.experimental.pallas import tpu as pltpu


def _layer_norm(x, gamma, beta, eps=1e-5):
    # x: (rows, D) f32, gamma/beta: (1, D) f32
    mean = jnp.mean(x, axis=-1, keepdims=True)
    var = jnp.mean((x - mean) ** 2, axis=-1, keepdims=True)
    inv = jax.lax.rsqrt(var + eps)
    return (x - mean) * inv * gamma + beta


def attention_block_kernel(
    x_ref,        # (nb, S, D)  f32
    w_in_ref,     # (D, 3D)     bf16  (in_proj_weight.T, Q part pre-scaled)
    b_in_ref,     # (1, 3D)     f32   (Q part pre-scaled)
    w_out_ref,    # (D, D)      bf16  (out_proj.weight.T)
    b_out_ref,    # (1, D)      f32
    ln1_g_ref,    # (1, D)      f32
    ln1_b_ref,    # (1, D)      f32
    w1_ref,       # (D, 4D)     bf16  (ffn[0].weight.T)
    b1_ref,       # (1, 4D)     f32
    w2_ref,       # (4D, D)     bf16  (ffn[2].weight.T)
    b2_ref,       # (1, D)      f32
    ln2_g_ref,    # (1, D)      f32
    ln2_b_ref,    # (1, D)      f32
    o_ref,        # (nb, S, D)
    *,
    n_heads: int,
):
    nb, S, D = x_ref.shape
    hd = D // n_heads
    rows = nb * S
    bh = nb * n_heads

    x = x_ref[...].astype(jnp.float32).reshape(rows, D)   # (rows, D) f32
    xb = x.astype(jnp.bfloat16)

    # --- QKV projection: single big-M matmul over all rows in this block ---
    qkv = jnp.dot(xb, w_in_ref[...],
                  preferred_element_type=jnp.float32) + b_in_ref[...]   # (rows, 3D)

    def split_heads(t):
        # (rows, D) -> (nb*H, S, hd) bf16, heads merged into the batch dim
        t = t.reshape(nb, S, n_heads, hd).transpose(0, 2, 1, 3)
        return t.reshape(bh, S, hd).astype(jnp.bfloat16)

    q = split_heads(qkv[:, 0 * D:1 * D])
    k = split_heads(qkv[:, 1 * D:2 * D])
    v = split_heads(qkv[:, 2 * D:3 * D])

    # --- attention: one batched QK^T, softmax, one batched PV --------------
    s = jnp.einsum('bqd,bkd->bqk', q, k,
                   preferred_element_type=jnp.float32)          # (nb*H, S, S) f32
    s = s - jnp.max(s, axis=-1, keepdims=True)
    p = jnp.exp(s)
    p = p * pl.reciprocal(jnp.sum(p, axis=-1, keepdims=True), approx=True)
    ctx = jnp.einsum('bqk,bkd->bqd', p.astype(jnp.bfloat16), v,
                     preferred_element_type=jnp.float32)        # (nb*H, S, hd)

    # merge heads back to (rows, D); single K=D output-projection matmul
    ctx = ctx.reshape(nb, n_heads, S, hd).transpose(0, 2, 1, 3).reshape(rows, D)
    attn_out = jnp.dot(ctx.astype(jnp.bfloat16), w_out_ref[...],
                       preferred_element_type=jnp.float32) + b_out_ref[...]

    # --- residual + LayerNorm1 (dropout = identity in eval) ---
    h1 = _layer_norm(x + attn_out, ln1_g_ref[...], ln1_b_ref[...])

    # --- FFN: Linear(D, 4D) -> ReLU -> Linear(4D, D), bf16 MXU / f32 acc ---
    f = jnp.dot(h1.astype(jnp.bfloat16), w1_ref[...],
                preferred_element_type=jnp.float32) + b1_ref[...]       # (rows, 4D)
    f = jnp.maximum(f, 0.0)
    f = jnp.dot(f.astype(jnp.bfloat16), w2_ref[...],
                preferred_element_type=jnp.float32) + b2_ref[...]       # (rows, D)

    # --- residual + LayerNorm2 (dropout = identity in eval) ---
    h2 = _layer_norm(h1 + f, ln2_g_ref[...], ln2_b_ref[...])

    o_ref[...] = h2.reshape(nb, S, D).astype(o_ref.dtype)


def _pick_batch_block(B, S, target_rows=256):
    """Largest divisor of B with nb*S near target_rows, capped at B//2 so the
    grid has >= 2 steps (pipelining + both v7x TensorCores get work)."""
    nb_cap = max(1, B // 2)
    nb = max(1, min(nb_cap, target_rows // max(S, 1)))
    while B % nb:
        nb -= 1
    return nb


def _vmem_limit_bytes(nb, S, D, n_heads):
    """Rough VMEM footprint: single-buffered weights + double-buffered x/o
    tiles + in-flight activations, with 2x headroom."""
    rows = nb * S
    weights = 24 * D * D + 48 * D               # bf16 weights + f32 biases/LN
    io = 2 * 2 * rows * D * 4                   # double-buffered x and o tiles (f32)
    acts = (rows * 3 * D * 4                    # qkv f32
            + 3 * rows * D * 2                  # q/k/v bf16
            + 2 * nb * n_heads * S * S * 4      # scores + probs f32
            + nb * n_heads * S * S * 2          # probs bf16
            + 2 * rows * D * 4                  # ctx / attn_out f32
            + rows * 4 * D * 4                  # FFN hidden f32
            + rows * 4 * D * 2                  # FFN hidden bf16
            + 6 * rows * D * 4)                 # residual / LN temporaries
    est = weights + io + acts
    return int(min(max(2 * est, 32 << 20), 112 << 20))


def _prepare_params(params, dim, n_heads):
    """Host-side layout plumbing: transpose weights, fold q-scale, cast to bf16."""
    hd = dim // n_heads
    scale = 1.0 / (hd ** 0.5)
    # scale only the Q third of the packed in-proj weight rows / bias entries
    scale_vec = jnp.concatenate(
        [jnp.full((dim,), scale, jnp.float32), jnp.ones((2 * dim,), jnp.float32)])
    w_in_scaled = params["w_in"] * scale_vec[:, None]     # (3D, D)
    b_in_scaled = params["b_in"] * scale_vec[None, :]     # (1, 3D)
    return dict(
        w_in_t=w_in_scaled.T.astype(jnp.bfloat16),        # (D, 3D)
        b_in=b_in_scaled.astype(jnp.float32),
        w_out_t=params["w_out"].T.astype(jnp.bfloat16),   # (D, D)
        b_out=params["b_out"].astype(jnp.float32),
        ln1_g=params["ln1_g"].astype(jnp.float32),
        ln1_b=params["ln1_b"].astype(jnp.float32),
        w1_t=params["w1"].T.astype(jnp.bfloat16),         # (D, 4D)
        b1=params["b1"].astype(jnp.float32),
        w2_t=params["w2"].T.astype(jnp.bfloat16),         # (4D, D)
        b2=params["b2"].astype(jnp.float32),
        ln2_g=params["ln2_g"].astype(jnp.float32),
        ln2_b=params["ln2_b"].astype(jnp.float32),
    )


def attention_block(x, params, *, n_heads=4, batch_block=None):
    """x: (B, S, D) float32. params: PyTorch-layout weights (see init_params)."""
    B, S, D = x.shape
    assert D % n_heads == 0
    nb = batch_block if batch_block is not None else _pick_batch_block(B, S)
    assert B % nb == 0
    prep = _prepare_params(params, D, n_heads)

    def wspec(shape):
        # constant index_map -> weights never re-DMA; single-buffer them
        zeros = (0,) * len(shape)
        return pl.BlockSpec(shape, lambda b, _z=zeros: _z,
                            pipeline_mode=pl.Buffered(1))

    in_specs = [
        pl.BlockSpec((nb, S, D), lambda b: (b, 0, 0)),   # x (batch block)
        wspec((D, 3 * D)),                               # w_in_t
        wspec((1, 3 * D)),                               # b_in
        wspec((D, D)),                                   # w_out_t
        wspec((1, D)),                                   # b_out
        wspec((1, D)),                                   # ln1_g
        wspec((1, D)),                                   # ln1_b
        wspec((D, 4 * D)),                               # w1_t
        wspec((1, 4 * D)),                               # b1
        wspec((4 * D, D)),                               # w2_t
        wspec((1, D)),                                   # b2
        wspec((1, D)),                                   # ln2_g
        wspec((1, D)),                                   # ln2_b
    ]

    kernel = functools.partial(attention_block_kernel, n_heads=n_heads)

    # Advisory cost estimate so XLA schedules neighbours around the fused call.
    rows_total = B * S
    cost = pl.CostEstimate(
        flops=int(rows_total * 24 * D * D + 4 * B * S * S * D),
        transcendentals=int(B * n_heads * S * S),
        bytes_accessed=int(2 * B * S * D * 4 + 24 * D * D + 48 * D),
    )

    return pl.pallas_call(
        kernel,
        out_shape=jax.ShapeDtypeStruct((B, S, D), x.dtype),
        grid_spec=pltpu.PrefetchScalarGridSpec(
            num_scalar_prefetch=0,
            grid=(B // nb,),
            in_specs=in_specs,
            out_specs=pl.BlockSpec((nb, S, D), lambda b: (b, 0, 0)),
        ),
        compiler_params=pltpu.CompilerParams(
            dimension_semantics=("parallel",),
            vmem_limit_bytes=_vmem_limit_bytes(nb, S, D, n_heads),
        ),
        cost_estimate=cost,
    )(
        x,
        prep["w_in_t"], prep["b_in"],
        prep["w_out_t"], prep["b_out"],
        prep["ln1_g"], prep["ln1_b"],
        prep["w1_t"], prep["b1"],
        prep["w2_t"], prep["b2"],
        prep["ln2_g"], prep["ln2_b"],
    )


def init_params(key, dim):
    """PyTorch-layout parameters (same convention as nn.MultiheadAttention etc.)."""
    ks = jax.random.split(key, 6)
    scale = 0.02
    return {
        "w_in": scale * jax.random.normal(ks[0], (3 * dim, dim), jnp.float32),
        "b_in": scale * jax.random.normal(ks[1], (1, 3 * dim), jnp.float32),
        "w_out": scale * jax.random.normal(ks[2], (dim, dim), jnp.float32),
        "b_out": jnp.zeros((1, dim), jnp.float32),
        "ln1_g": jnp.ones((1, dim), jnp.float32),
        "ln1_b": jnp.zeros((1, dim), jnp.float32),
        "ln2_g": jnp.ones((1, dim), jnp.float32),
        "ln2_b": jnp.zeros((1, dim), jnp.float32),
        "w1": scale * jax.random.normal(ks[3], (4 * dim, dim), jnp.float32),
        "b1": scale * jax.random.normal(ks[4], (1, 4 * dim), jnp.float32),
        "w2": scale * jax.random.normal(ks[5], (dim, 4 * dim), jnp.float32),
        "b2": jnp.zeros((1, dim), jnp.float32),
    }


def attention_block_reference(x, params, *, n_heads=4):
    """Pure-JAX f32 reference of the PyTorch forward (eval mode)."""
    B, S, D = x.shape
    hd = D // n_heads
    scale = 1.0 / (hd ** 0.5)
    qkv = jnp.einsum('bsd,ed->bse', x, params["w_in"]) + params["b_in"][0]
    q, k, v = qkv[..., :D], qkv[..., D:2 * D], qkv[..., 2 * D:]
    q = q.reshape(B, S, n_heads, hd).transpose(0, 2, 1, 3) * scale
    k = k.reshape(B, S, n_heads, hd).transpose(0, 2, 1, 3)
    v = v.reshape(B, S, n_heads, hd).transpose(0, 2, 1, 3)
    s = jnp.einsum('bhqd,bhkd->bhqk', q, k)
    p = jax.nn.softmax(s, axis=-1)
    ctx = jnp.einsum('bhqk,bhkd->bhqd', p, v).transpose(0, 2, 1, 3).reshape(B, S, D)
    attn = jnp.einsum('bsd,ed->bse', ctx, params["w_out"]) + params["b_out"][0]

    def ln(y, g, b):
        m = y.mean(-1, keepdims=True)
        var = ((y - m) ** 2).mean(-1, keepdims=True)
        return (y - m) / jnp.sqrt(var + 1e-5) * g[0] + b[0]

    h1 = ln(x + attn, params["ln1_g"], params["ln1_b"])
    f = jnp.maximum(jnp.einsum('bsd,ed->bse', h1, params["w1"]) + params["b1"][0], 0.0)
    f = jnp.einsum('bsd,ed->bse', f, params["w2"]) + params["b2"][0]
    return ln(h1 + f, params["ln2_g"], params["ln2_b"])


if __name__ == "__main__":
    B, S, D, H = 2, 8, 32, 4
    key = jax.random.PRNGKey(0)
    kx, kp = jax.random.split(key)
    x = jax.random.normal(kx, (B, S, D), jnp.float32)
    params = init_params(kp, D)

    out = attention_block(x, params, n_heads=H)
    out = jax.block_until_ready(out)
    assert out.shape == (B, S, D)
    assert jnp.all(jnp.isfinite(out))

    ref = attention_block_reference(x, params, n_heads=H)
    max_err = float(jnp.max(jnp.abs(out - ref)))
    # bf16 MXU operands + approx reciprocal -> loose tolerance vs f32 reference
    assert max_err < 5e-2, f"max abs error vs reference: {max_err}"

    print("KERNEL_OK")
</pallas_src>

<mosaic_0001>
module attributes {stable_mosaic.version = 11 : i64} {
  func.func @attention_block_kernel(%arg0: i32, %arg1: memref<1x8x32xf32, #tpu.memory_space<vmem>>, %arg2: memref<32x96xbf16, #tpu.memory_space<vmem>>, %arg3: memref<1x96xf32, #tpu.memory_space<vmem>>, %arg4: memref<32x32xbf16, #tpu.memory_space<vmem>>, %arg5: memref<1x32xf32, #tpu.memory_space<vmem>>, %arg6: memref<1x32xf32, #tpu.memory_space<vmem>>, %arg7: memref<1x32xf32, #tpu.memory_space<vmem>>, %arg8: memref<32x128xbf16, #tpu.memory_space<vmem>>, %arg9: memref<1x128xf32, #tpu.memory_space<vmem>>, %arg10: memref<128x32xbf16, #tpu.memory_space<vmem>>, %arg11: memref<1x32xf32, #tpu.memory_space<vmem>>, %arg12: memref<1x32xf32, #tpu.memory_space<vmem>>, %arg13: memref<1x32xf32, #tpu.memory_space<vmem>>, %arg14: memref<1x8x32xf32, #tpu.memory_space<vmem>>) attributes {dimension_semantics = [#tpu.dimension_semantics<parallel>], iteration_bounds = array<i64: 2>, scalar_prefetch = 0 : i64, scratch_operands = 0 : i64, tpu.core_type = #tpu.core_type<tc>, window_params = [{transform_indices = @transform_0, window_bounds = array<i64: 1, 8, 32>}, {pipeline_mode = #tpu.pipeline_mode<synchronous>, transform_indices = @transform_1, window_bounds = array<i64: 32, 96>}, {pipeline_mode = #tpu.pipeline_mode<synchronous>, transform_indices = @transform_2, window_bounds = array<i64: 1, 96>}, {pipeline_mode = #tpu.pipeline_mode<synchronous>, transform_indices = @transform_3, window_bounds = array<i64: 32, 32>}, {pipeline_mode = #tpu.pipeline_mode<synchronous>, transform_indices = @transform_4, window_bounds = array<i64: 1, 32>}, {pipeline_mode = #tpu.pipeline_mode<synchronous>, transform_indices = @transform_5, window_bounds = array<i64: 1, 32>}, {pipeline_mode = #tpu.pipeline_mode<synchronous>, transform_indices = @transform_6, window_bounds = array<i64: 1, 32>}, {pipeline_mode = #tpu.pipeline_mode<synchronous>, transform_indices = @transform_7, window_bounds = array<i64: 32, 128>}, {pipeline_mode = #tpu.pipeline_mode<synchronous>, transform_indices = @transform_8, window_bounds = array<i64: 1, 128>}, {pipeline_mode = #tpu.pipeline_mode<synchronous>, transform_indices = @transform_9, window_bounds = array<i64: 128, 32>}, {pipeline_mode = #tpu.pipeline_mode<synchronous>, transform_indices = @transform_10, window_bounds = array<i64: 1, 32>}, {pipeline_mode = #tpu.pipeline_mode<synchronous>, transform_indices = @transform_11, window_bounds = array<i64: 1, 32>}, {pipeline_mode = #tpu.pipeline_mode<synchronous>, transform_indices = @transform_12, window_bounds = array<i64: 1, 32>}, {transform_indices = @transform_13, window_bounds = array<i64: 1, 8, 32>}]} {
    %c0 = arith.constant 0 : index
    %c0_0 = arith.constant 0 : index
    %c0_1 = arith.constant 0 : index
    %0 = vector.load %arg1[%c0, %c0_0, %c0_1] : memref<1x8x32xf32, #tpu.memory_space<vmem>>, vector<1x8x32xf32>
    %1 = vector.shape_cast %0 : vector<1x8x32xf32> to vector<8x32xf32>
    %2 = arith.truncf %1 : vector<8x32xf32> to vector<8x32xbf16>
    %c0_2 = arith.constant 0 : index
    %c0_3 = arith.constant 0 : index
    %3 = vector.load %arg2[%c0_2, %c0_3] : memref<32x96xbf16, #tpu.memory_space<vmem>>, vector<32x96xbf16>
    %cst = arith.constant dense<0.000000e+00> : vector<8x96xf32>
    %4 = tpu.matmul %2, %3, %cst {dimension_numbers = #tpu.dot_dimension_numbers<[1], [0], [0], [1], [0, 0, 1, 1], [], []>} : vector<8x32xbf16>, vector<32x96xbf16>, vector<8x96xf32> -> vector<8x96xf32>
    %c0_4 = arith.constant 0 : index
    %c0_5 = arith.constant 0 : index
    %5 = vector.load %arg3[%c0_4, %c0_5] : memref<1x96xf32, #tpu.memory_space<vmem>>, vector<1x96xf32>
    %6 = vector.broadcast %5 : vector<1x96xf32> to vector<8x96xf32>
    %7 = arith.addf %4, %6 : vector<8x96xf32>
    %8 = vector.extract_strided_slice %7 {offsets = [0, 0], sizes = [8, 32], strides = [1, 1]} : vector<8x96xf32> to vector<8x32xf32>
    %9 = vector.shape_cast %8 : vector<8x32xf32> to vector<1x8x4x8xf32>
    %10 = tpu.transpose %9, [0, 2, 1, 3] : vector<1x8x4x8xf32> -> vector<1x4x8x8xf32>
    %11 = vector.shape_cast %10 : vector<1x4x8x8xf32> to vector<4x8x8xf32>
    %12 = arith.truncf %11 : vector<4x8x8xf32> to vector<4x8x8xbf16>
    %13 = vector.extract_strided_slice %7 {offsets = [0, 32], sizes = [8, 32], strides = [1, 1]} : vector<8x96xf32> to vector<8x32xf32>
    %14 = vector.shape_cast %13 : vector<8x32xf32> to vector<1x8x4x8xf32>
    %15 = tpu.transpose %14, [0, 2, 1, 3] : vector<1x8x4x8xf32> -> vector<1x4x8x8xf32>
    %16 = vector.shape_cast %15 : vector<1x4x8x8xf32> to vector<4x8x8xf32>
    %17 = arith.truncf %16 : vector<4x8x8xf32> to vector<4x8x8xbf16>
    %18 = vector.extract_strided_slice %7 {offsets = [0, 64], sizes = [8, 32], strides = [1, 1]} : vector<8x96xf32> to vector<8x32xf32>
    %19 = vector.shape_cast %18 : vector<8x32xf32> to vector<1x8x4x8xf32>
    %20 = tpu.transpose %19, [0, 2, 1, 3] : vector<1x8x4x8xf32> -> vector<1x4x8x8xf32>
    %21 = vector.shape_cast %20 : vector<1x4x8x8xf32> to vector<4x8x8xf32>
    %22 = arith.truncf %21 : vector<4x8x8xf32> to vector<4x8x8xbf16>
    "tpu.trace_start"() <{level = 10 : i32, message = "bqd,bkd->bqk"}> : () -> ()
    %cst_6 = arith.constant dense<0.000000e+00> : vector<4x8x8xf32>
    %23 = tpu.matmul %12, %17, %cst_6 {dimension_numbers = #tpu.dot_dimension_numbers<[2], [2], [1], [1], [0, 0, 0, 1, 1, 1], [0], [0]>} : vector<4x8x8xbf16>, vector<4x8x8xbf16>, vector<4x8x8xf32> -> vector<4x8x8xf32>
    "tpu.trace_stop"() : () -> ()
    %cst_7 = arith.constant dense<0xFF800000> : vector<4x8xf32>
    %24 = vector.multi_reduction <maximumf>, %23, %cst_7 [2] : vector<4x8x8xf32> to vector<4x8xf32>
    %25 = vector.shape_cast %24 : vector<4x8xf32> to vector<4x8x1xf32>
    %26 = vector.broadcast %25 : vector<4x8x1xf32> to vector<4x8x8xf32>
    %27 = arith.subf %23, %26 : vector<4x8x8xf32>
    %28 = math.exp %27 : vector<4x8x8xf32>
    %cst_8 = arith.constant dense<0.000000e+00> : vector<4x8xf32>
    %29 = vector.multi_reduction <add>, %28, %cst_8 [2] : vector<4x8x8xf32> to vector<4x8xf32>
    %30 = vector.shape_cast %29 : vector<4x8xf32> to vector<4x8x1xf32>
    %31 = tpu.reciprocal %30 {approx = true} : vector<4x8x1xf32> -> vector<4x8x1xf32>
    %32 = vector.broadcast %31 : vector<4x8x1xf32> to vector<4x8x8xf32>
    %33 = arith.mulf %28, %32 : vector<4x8x8xf32>
    %34 = arith.truncf %33 : vector<4x8x8xf32> to vector<4x8x8xbf16>
    "tpu.trace_start"() <{level = 10 : i32, message = "bqk,bkd->bqd"}> : () -> ()
    %cst_9 = arith.constant dense<0.000000e+00> : vector<4x8x8xf32>
    %35 = tpu.matmul %34, %22, %cst_9 {dimension_numbers = #tpu.dot_dimension_numbers<[2], [1], [1], [2], [0, 0, 0, 1, 1, 2], [0], [0]>} : vector<4x8x8xbf16>, vector<4x8x8xbf16>, vector<4x8x8xf32> -> vector<4x8x8xf32>
    "tpu.trace_stop"() : () -> ()
    %36 = vector.shape_cast %35 : vector<4x8x8xf32> to vector<1x4x8x8xf32>
    %37 = tpu.transpose %36, [0, 2, 1, 3] : vector<1x4x8x8xf32> -> vector<1x8x4x8xf32>
    %38 = vector.shape_cast %37 : vector<1x8x4x8xf32> to vector<8x32xf32>
    %39 = arith.truncf %38 : vector<8x32xf32> to vector<8x32xbf16>
    %c0_10 = arith.constant 0 : index
    %c0_11 = arith.constant 0 : index
    %40 = vector.load %arg4[%c0_10, %c0_11] : memref<32x32xbf16, #tpu.memory_space<vmem>>, vector<32x32xbf16>
    %cst_12 = arith.constant dense<0.000000e+00> : vector<8x32xf32>
    %41 = tpu.matmul %39, %40, %cst_12 {dimension_numbers = #tpu.dot_dimension_numbers<[1], [0], [0], [1], [0, 0, 1, 1], [], []>} : vector<8x32xbf16>, vector<32x32xbf16>, vector<8x32xf32> -> vector<8x32xf32>
    %c0_13 = arith.constant 0 : index
    %c0_14 = arith.constant 0 : index
    %42 = vector.load %arg5[%c0_13, %c0_14] : memref<1x32xf32, #tpu.memory_space<vmem>>, vector<1x32xf32>
    %43 = vector.broadcast %42 : vector<1x32xf32> to vector<8x32xf32>
    %44 = arith.addf %41, %43 : vector<8x32xf32>
    %45 = arith.addf %1, %44 : vector<8x32xf32>
    %c0_15 = arith.constant 0 : index
    %c0_16 = arith.constant 0 : index
    %46 = vector.load %arg6[%c0_15, %c0_16] : memref<1x32xf32, #tpu.memory_space<vmem>>, vector<1x32xf32>
    %c0_17 = arith.constant 0 : index
    %c0_18 = arith.constant 0 : index
    %47 = vector.load %arg7[%c0_17, %c0_18] : memref<1x32xf32, #tpu.memory_space<vmem>>, vector<1x32xf32>
    %cst_19 = arith.constant dense<0.000000e+00> : vector<8xf32>
    %48 = vector.multi_reduction <add>, %45, %cst_19 [1] : vector<8x32xf32> to vector<8xf32>
    %49 = vector.shape_cast %48 : vector<8xf32> to vector<8x1xf32>
    %cst_20 = arith.constant 3.200000e+01 : f32
    %50 = vector.broadcast %cst_20 : f32 to vector<8x1xf32>
    %51 = arith.divf %49, %50 : vector<8x1xf32>
    %52 = vector.broadcast %51 : vector<8x1xf32> to vector<8x32xf32>
    %53 = arith.subf %45, %52 : vector<8x32xf32>
    %54 = arith.mulf %53, %53 : vector<8x32xf32>
    %cst_21 = arith.constant dense<0.000000e+00> : vector<8xf32>
    %55 = vector.multi_reduction <add>, %54, %cst_21 [1] : vector<8x32xf32> to vector<8xf32>
    %56 = vector.shape_cast %55 : vector<8xf32> to vector<8x1xf32>
    %cst_22 = arith.constant 3.200000e+01 : f32
    %57 = vector.broadcast %cst_22 : f32 to vector<8x1xf32>
    %58 = arith.divf %56, %57 : vector<8x1xf32>
    %cst_23 = arith.constant 9.99999974E-6 : f32
    %59 = vector.broadcast %cst_23 : f32 to vector<8x1xf32>
    %60 = arith.addf %58, %59 : vector<8x1xf32>
    %61 = math.rsqrt %60 : vector<8x1xf32>
    %62 = vector.broadcast %51 : vector<8x1xf32> to vector<8x32xf32>
    %63 = arith.subf %45, %62 : vector<8x32xf32>
    %64 = vector.broadcast %61 : vector<8x1xf32> to vector<8x32xf32>
    %65 = arith.mulf %63, %64 : vector<8x32xf32>
    %66 = vector.broadcast %46 : vector<1x32xf32> to vector<8x32xf32>
    %67 = arith.mulf %65, %66 : vector<8x32xf32>
    %68 = vector.broadcast %47 : vector<1x32xf32> to vector<8x32xf32>
    %69 = arith.addf %67, %68 : vector<8x32xf32>
    %70 = arith.truncf %69 : vector<8x32xf32> to vector<8x32xbf16>
    %c0_24 = arith.constant 0 : index
    %c0_25 = arith.constant 0 : index
    %71 = vector.load %arg8[%c0_24, %c0_25] : memref<32x128xbf16, #tpu.memory_space<vmem>>, vector<32x128xbf16>
    %cst_26 = arith.constant dense<0.000000e+00> : vector<8x128xf32>
    %72 = tpu.matmul %70, %71, %cst_26 {dimension_numbers = #tpu.dot_dimension_numbers<[1], [0], [0], [1], [0, 0, 1, 1], [], []>} : vector<8x32xbf16>, vector<32x128xbf16>, vector<8x128xf32> -> vector<8x128xf32>
    %c0_27 = arith.constant 0 : index
    %c0_28 = arith.constant 0 : index
    %73 = vector.load %arg9[%c0_27, %c0_28] : memref<1x128xf32, #tpu.memory_space<vmem>>, vector<1x128xf32>
    %74 = vector.broadcast %73 : vector<1x128xf32> to vector<8x128xf32>
    %75 = arith.addf %72, %74 : vector<8x128xf32>
    %cst_29 = arith.constant 0.000000e+00 : f32
    %76 = vector.broadcast %cst_29 : f32 to vector<8x128xf32>
    %77 = arith.maximumf %75, %76 : vector<8x128xf32>
    %78 = arith.truncf %77 : vector<8x128xf32> to vector<8x128xbf16>
    %c0_30 = arith.constant 0 : index
    %c0_31 = arith.constant 0 : index
    %79 = vector.load %arg10[%c0_30, %c0_31] : memref<128x32xbf16, #tpu.memory_space<vmem>>, vector<128x32xbf16>
    %cst_32 = arith.constant dense<0.000000e+00> : vector<8x32xf32>
    %80 = tpu.matmul %78, %79, %cst_32 {dimension_numbers = #tpu.dot_dimension_numbers<[1], [0], [0], [1], [0, 0, 1, 1], [], []>} : vector<8x128xbf16>, vector<128x32xbf16>, vector<8x32xf32> -> vector<8x32xf32>
    %c0_33 = arith.constant 0 : index
    %c0_34 = arith.constant 0 : index
    %81 = vector.load %arg11[%c0_33, %c0_34] : memref<1x32xf32, #tpu.memory_space<vmem>>, vector<1x32xf32>
    %82 = vector.broadcast %81 : vector<1x32xf32> to vector<8x32xf32>
    %83 = arith.addf %80, %82 : vector<8x32xf32>
    %84 = arith.addf %69, %83 : vector<8x32xf32>
    %c0_35 = arith.constant 0 : index
    %c0_36 = arith.constant 0 : index
    %85 = vector.load %arg12[%c0_35, %c0_36] : memref<1x32xf32, #tpu.memory_space<vmem>>, vector<1x32xf32>
    %c0_37 = arith.constant 0 : index
    %c0_38 = arith.constant 0 : index
    %86 = vector.load %arg13[%c0_37, %c0_38] : memref<1x32xf32, #tpu.memory_space<vmem>>, vector<1x32xf32>
    %cst_39 = arith.constant dense<0.000000e+00> : vector<8xf32>
    %87 = vector.multi_reduction <add>, %84, %cst_39 [1] : vector<8x32xf32> to vector<8xf32>
    %88 = vector.shape_cast %87 : vector<8xf32> to vector<8x1xf32>
    %cst_40 = arith.constant 3.200000e+01 : f32
    %89 = vector.broadcast %cst_40 : f32 to vector<8x1xf32>
    %90 = arith.divf %88, %89 : vector<8x1xf32>
    %91 = vector.broadcast %90 : vector<8x1xf32> to vector<8x32xf32>
    %92 = arith.subf %84, %91 : vector<8x32xf32>
    %93 = arith.mulf %92, %92 : vector<8x32xf32>
    %cst_41 = arith.constant dense<0.000000e+00> : vector<8xf32>
    %94 = vector.multi_reduction <add>, %93, %cst_41 [1] : vector<8x32xf32> to vector<8xf32>
    %95 = vector.shape_cast %94 : vector<8xf32> to vector<8x1xf32>
    %cst_42 = arith.constant 3.200000e+01 : f32
    %96 = vector.broadcast %cst_42 : f32 to vector<8x1xf32>
    %97 = arith.divf %95, %96 : vector<8x1xf32>
    %cst_43 = arith.constant 9.99999974E-6 : f32
    %98 = vector.broadcast %cst_43 : f32 to vector<8x1xf32>
    %99 = arith.addf %97, %98 : vector<8x1xf32>
    %100 = math.rsqrt %99 : vector<8x1xf32>
    %101 = vector.broadcast %90 : vector<8x1xf32> to vector<8x32xf32>
    %102 = arith.subf %84, %101 : vector<8x32xf32>
    %103 = vector.broadcast %100 : vector<8x1xf32> to vector<8x32xf32>
    %104 = arith.mulf %102, %103 : vector<8x32xf32>
    %105 = vector.broadcast %85 : vector<1x32xf32> to vector<8x32xf32>
    %106 = arith.mulf %104, %105 : vector<8x32xf32>
    %107 = vector.broadcast %86 : vector<1x32xf32> to vector<8x32xf32>
    %108 = arith.addf %106, %107 : vector<8x32xf32>
    %109 = vector.shape_cast %108 : vector<8x32xf32> to vector<1x8x32xf32>
    %c0_44 = arith.constant 0 : index
    %c0_45 = arith.constant 0 : index
    %c0_46 = arith.constant 0 : index
    %110 = vector.load %arg14[%c0_44, %c0_45, %c0_46] : memref<1x8x32xf32, #tpu.memory_space<vmem>>, vector<1x8x32xf32>
    tpu.vector_store %arg14[%c0_44, %c0_45, %c0_46], %109 {strides = array<i32>} : memref<1x8x32xf32, #tpu.memory_space<vmem>>, vector<1x8x32xf32>,
    return
  }
  func.func @transform_0(%arg0: i32) -> (i32, i32, i32) {
    %c0_i32 = arith.constant 0 : i32
    %c0_i32_0 = arith.constant 0 : i32
    %c0_i32_1 = arith.constant 0 : i32
    return %arg0, %c0_i32, %c0_i32_0 : i32, i32, i32
  }
  func.func @transform_1(%arg0: i32) -> (i32, i32) {
    %c0_i32 = arith.constant 0 : i32
    %c0_i32_0 = arith.constant 0 : i32
    %c0_i32_1 = arith.constant 0 : i32
    return %c0_i32, %c0_i32_0 : i32, i32
  }
  func.func @transform_2(%arg0: i32) -> (i32, i32) {
    %c0_i32 = arith.constant 0 : i32
    %c0_i32_0 = arith.constant 0 : i32
    %c0_i32_1 = arith.constant 0 : i32
    return %c0_i32, %c0_i32_0 : i32, i32
  }
  func.func @transform_3(%arg0: i32) -> (i32, i32) {
    %c0_i32 = arith.constant 0 : i32
    %c0_i32_0 = arith.constant 0 : i32
    %c0_i32_1 = arith.constant 0 : i32
    return %c0_i32, %c0_i32_0 : i32, i32
  }
  func.func @transform_4(%arg0: i32) -> (i32, i32) {
    %c0_i32 = arith.constant 0 : i32
    %c0_i32_0 = arith.constant 0 : i32
    %c0_i32_1 = arith.constant 0 : i32
    return %c0_i32, %c0_i32_0 : i32, i32
  }
  func.func @transform_5(%arg0: i32) -> (i32, i32) {
    %c0_i32 = arith.constant 0 : i32
    %c0_i32_0 = arith.constant 0 : i32
    %c0_i32_1 = arith.constant 0 : i32
    return %c0_i32, %c0_i32_0 : i32, i32
  }
  func.func @transform_6(%arg0: i32) -> (i32, i32) {
    %c0_i32 = arith.constant 0 : i32
    %c0_i32_0 = arith.constant 0 : i32
    %c0_i32_1 = arith.constant 0 : i32
    return %c0_i32, %c0_i32_0 : i32, i32
  }
  func.func @transform_7(%arg0: i32) -> (i32, i32) {
    %c0_i32 = arith.constant 0 : i32
    %c0_i32_0 = arith.constant 0 : i32
    %c0_i32_1 = arith.constant 0 : i32
    return %c0_i32, %c0_i32_0 : i32, i32
  }
  func.func @transform_8(%arg0: i32) -> (i32, i32) {
    %c0_i32 = arith.constant 0 : i32
    %c0_i32_0 = arith.constant 0 : i32
    %c0_i32_1 = arith.constant 0 : i32
    return %c0_i32, %c0_i32_0 : i32, i32
  }
  func.func @transform_9(%arg0: i32) -> (i32, i32) {
    %c0_i32 = arith.constant 0 : i32
    %c0_i32_0 = arith.constant 0 : i32
    %c0_i32_1 = arith.constant 0 : i32
    return %c0_i32, %c0_i32_0 : i32, i32
  }
  func.func @transform_10(%arg0: i32) -> (i32, i32) {
    %c0_i32 = arith.constant 0 : i32
    %c0_i32_0 = arith.constant 0 : i32
    %c0_i32_1 = arith.constant 0 : i32
    return %c0_i32, %c0_i32_0 : i32, i32
  }
  func.func @transform_11(%arg0: i32) -> (i32, i32) {
    %c0_i32 = arith.constant 0 : i32
    %c0_i32_0 = arith.constant 0 : i32
    %c0_i32_1 = arith.constant 0 : i32
    return %c0_i32, %c0_i32_0 : i32, i32
  }
  func.func @transform_12(%arg0: i32) -> (i32, i32) {
    %c0_i32 = arith.constant 0 : i32
    %c0_i32_0 = arith.constant 0 : i32
    %c0_i32_1 = arith.constant 0 : i32
    return %c0_i32, %c0_i32_0 : i32, i32
  }
  func.func @transform_13(%arg0: i32) -> (i32, i32, i32) {
    %c0_i32 = arith.constant 0 : i32
    %c0_i32_0 = arith.constant 0 : i32
    %c0_i32_1 = arith.constant 0 : i32
    return %arg0, %c0_i32, %c0_i32_0 : i32, i32, i32
  }
}

</mosaic_0001>

<llo_original>
// kernel: tpu_custom_call.1
$region0: #{tpu_custom_call.1}
  #allocation0 [shape = 'u32[]', space=smem, size = 0x4, offset = 0x4, fixed_abs, tag = 'smem constant byte address 0x4 - core index']
  #allocation1 [shape = 'u32[144,128]{1,0:T(1,128)}', space=vmem, size = 0x12000, scoped, tag = 'internal scratch']
  %s0 = inlined_call_operand.vmem [shape: f32[2,8,32], index: 0, kind: input, shape index: {}]
  %s1 = inlined_call_operand.vmem [shape: bf16[32,96], index: 1, kind: input, shape index: {}]
  %s2 = inlined_call_operand.vmem [shape: f32[1,96], index: 2, kind: input, shape index: {}]
  %s3 = inlined_call_operand.vmem [shape: bf16[32,32], index: 3, kind: input, shape index: {}]
  %s4 = inlined_call_operand.vmem [shape: f32[1,32], index: 4, kind: input, shape index: {}]
  %s5 = inlined_call_operand.vmem [shape: f32[1,32], index: 5, kind: input, shape index: {}]
  %s6 = inlined_call_operand.vmem [shape: f32[1,32], index: 6, kind: input, shape index: {}]
  %s7 = inlined_call_operand.vmem [shape: bf16[32,128], index: 7, kind: input, shape index: {}]
  %s8 = inlined_call_operand.vmem [shape: f32[1,128], index: 8, kind: input, shape index: {}]
  %s9 = inlined_call_operand.vmem [shape: bf16[128,32], index: 9, kind: input, shape index: {}]
  %s10 = inlined_call_operand.vmem [shape: f32[1,32], index: 10, kind: input, shape index: {}]
  %s11 = inlined_call_operand.vmem [shape: f32[1,32], index: 11, kind: input, shape index: {}]
  %s12 = inlined_call_operand.vmem [shape: f32[1,32], index: 12, kind: input, shape index: {}]
  %s13 = inlined_call_operand.hbm [shape: f32[2,8,32], index: 13, kind: output, shape index: {}]
  %s14 = sld [smem:[#allocation0]]
  $region85: #{tpu_custom_call.1} parent=0
    _
  %s16 = ssub.s32 1, %s14
  %s17 = scalar_select 0, %s16, %s14
  $region1: #{tpu_custom_call.1} parent=0
    #allocation2 [shape = 'u8[8192]{0}', space=vmem, size = 0x2000, scoped, tag = 'output window, operand 0']
    #allocation3 [shape = 's32[2]{0}', space=sflag, size = 0x8, scoped, tag = 'scoped memory for tpu_custom_call.1']
    %18 = vsyncpa [#allocation3], 0
    %s19 = scalar_lea.sflag [#allocation3], 1
    %20 = vsyncpa %s19, 0
    loop: start=0, step=1, limit=4
    $region2: #{tpu_custom_call.1} parent=1 // loop_pre_header
      _
    $region3: #{tpu_custom_call.1} parent=1 // loop_header
      %s22 = sphi 0, %s26
      %p23 = scmp.ge.s32.totalorder %s22, 4
      %s32 = sphi 0, %s34
      %s35 = sphi 0, %s32
      %s36 = sphi 0, %s35
      %s52 = sphi 0, %s36
      %s56 = sphi 0, %s56
      %s58 = sphi 0, %s56
      %s59 = sphi 0, %s58
      %s73 = sphi 0, %s59
      %s77 = sphi 0, %s77
      %s79 = sphi 0, %s77
      %s80 = sphi 0, %s79
      %s94 = sphi 0, %s80
      %s98 = sphi 0, %s98
      %s100 = sphi 0, %s98
      %s101 = sphi 0, %s100
      %s115 = sphi 0, %s101
      %s119 = sphi 0, %s119
      %s121 = sphi 0, %s119
      %s122 = sphi 0, %s121
      %s136 = sphi 0, %s122
      %s140 = sphi 0, %s140
      %s142 = sphi 0, %s140
      %s143 = sphi 0, %s142
      %s157 = sphi 0, %s143
      %s161 = sphi 0, %s161
      %s163 = sphi 0, %s161
      %s164 = sphi 0, %s163
      %s178 = sphi 0, %s164
      %s182 = sphi 0, %s182
      %s184 = sphi 0, %s182
      %s185 = sphi 0, %s184
      %s199 = sphi 0, %s185
      %s203 = sphi 0, %s203
      %s205 = sphi 0, %s203
      %s206 = sphi 0, %s205
      %s220 = sphi 0, %s206
      %s224 = sphi 0, %s224
      %s226 = sphi 0, %s224
      %s227 = sphi 0, %s226
      %s241 = sphi 0, %s227
      %s245 = sphi 0, %s245
      %s247 = sphi 0, %s245
      %s248 = sphi 0, %s247
      %s262 = sphi 0, %s248
      %s266 = sphi 0, %s266
      %s268 = sphi 0, %s266
      %s269 = sphi 0, %s268
      %s283 = sphi 0, %s269
      %s287 = sphi 0, %s287
      %s289 = sphi 0, %s287
      %s290 = sphi 0, %s289
      %s304 = sphi 0, %s290
      %s310 = sphi 0, %s312
      %s313 = sphi 0, %s310
      %s314 = sphi 0, %s313
      %s330 = sphi 0, %s314
    $region4: #{tpu_custom_call.1} parent=1 // loop_header_branch
      %25 = sbr.rel (%p23) target = $region8
    $region5: #{tpu_custom_call.1} parent=1 // loop_body
      %s27 = ssub.s32 %s22, 1
      %s28 = ssub.s32 %s22, 2
      %s29 = sadd.s32 %s22, 1
      %s30 = ssub.s32 %s22, %s29
      %p31 = scmp.eq.s32.totalorder %s30, 0
      %s33 = sadd.s32 %s32, 1
      %s34 = scalar_select %p31, %s32, %s33
      %p37 = pneg %p31
      %p38 = scmp.eq.s32.totalorder %s22, 1
      %p39 = por %p37, %p38
      %p40 = scmp.ne.s32.totalorder %s32, %s35
      %p41 = scmp.eq.s32.totalorder %s22, 0
      %p42 = por %p40, %p41
      %p43 = scmp.ne.s32.totalorder %s32, %s35
      %p44 = scmp.eq.s32.totalorder %s27, 1
      %p45 = por %p43, %p44
      %p46 = scmp.ne.s32.totalorder %s35, %s36
      %p47 = scmp.eq.s32.totalorder %s27, 0
      %p48 = por %p46, %p47
      %p49 = scmp.ne.s32.totalorder %s35, %s36
      %p50 = scmp.eq.s32.totalorder %s28, 1
      %p51 = por %p49, %p50
      %p53 = scmp.ne.s32.totalorder %s36, %s52
      %p54 = scmp.eq.s32.totalorder %s28, 0
      %p55 = por %p53, %p54
      %s57 = sadd.s32 %s56, 1
      %p60 = scmp.eq.s32.totalorder %s22, 1
      %p61 = scmp.ne.s32.totalorder %s56, %s58
      %p62 = scmp.eq.s32.totalorder %s22, 0
      %p63 = por %p61, %p62
      %p64 = scmp.ne.s32.totalorder %s56, %s58
      %p65 = scmp.eq.s32.totalorder %s27, 1
      %p66 = por %p64, %p65
      %p67 = scmp.ne.s32.totalorder %s58, %s59
      %p68 = scmp.eq.s32.totalorder %s27, 0
      %p69 = por %p67, %p68
      %p70 = scmp.ne.s32.totalorder %s58, %s59
      %p71 = scmp.eq.s32.totalorder %s28, 1
      %p72 = por %p70, %p71
      %p74 = scmp.ne.s32.totalorder %s59, %s73
      %p75 = scmp.eq.s32.totalorder %s28, 0
      %p76 = por %p74, %p75
      %s78 = sadd.s32 %s77, 1
      %p81 = scmp.eq.s32.totalorder %s22, 1
      %p82 = scmp.ne.s32.totalorder %s77, %s79
      %p83 = scmp.eq.s32.totalorder %s22, 0
      %p84 = por %p82, %p83
      %p85 = scmp.ne.s32.totalorder %s77, %s79
      %p86 = scmp.eq.s32.totalorder %s27, 1
      %p87 = por %p85, %p86
      %p88 = scmp.ne.s32.totalorder %s79, %s80
      %p89 = scmp.eq.s32.totalorder %s27, 0
      %p90 = por %p88, %p89
      %p91 = scmp.ne.s32.totalorder %s79, %s80
      %p92 = scmp.eq.s32.totalorder %s28, 1
      %p93 = por %p91, %p92
      %p95 = scmp.ne.s32.totalorder %s80, %s94
      %p96 = scmp.eq.s32.totalorder %s28, 0
      %p97 = por %p95, %p96
      %s99 = sadd.s32 %s98, 1
      %p102 = scmp.eq.s32.totalorder %s22, 1
      %p103 = scmp.ne.s32.totalorder %s98, %s100
      %p104 = scmp.eq.s32.totalorder %s22, 0
      %p105 = por %p103, %p104
      %p106 = scmp.ne.s32.totalorder %s98, %s100
      %p107 = scmp.eq.s32.totalorder %s27, 1
      %p108 = por %p106, %p107
      %p109 = scmp.ne.s32.totalorder %s100, %s101
      %p110 = scmp.eq.s32.totalorder %s27, 0
      %p111 = por %p109, %p110
      %p112 = scmp.ne.s32.totalorder %s100, %s101
      %p113 = scmp.eq.s32.totalorder %s28, 1
      %p114 = por %p112, %p113
      %p116 = scmp.ne.s32.totalorder %s101, %s115
      %p117 = scmp.eq.s32.totalorder %s28, 0
      %p118 = por %p116, %p117
      %s120 = sadd.s32 %s119, 1
      %p123 = scmp.eq.s32.totalorder %s22, 1
      %p124 = scmp.ne.s32.totalorder %s119, %s121
      %p125 = scmp.eq.s32.totalorder %s22, 0
      %p126 = por %p124, %p125
      %p127 = scmp.ne.s32.totalorder %s119, %s121
      %p128 = scmp.eq.s32.totalorder %s27, 1
      %p129 = por %p127, %p128
      %p130 = scmp.ne.s32.totalorder %s121, %s122
      %p131 = scmp.eq.s32.totalorder %s27, 0
      %p132 = por %p130, %p131
      %p133 = scmp.ne.s32.totalorder %s121, %s122
      %p134 = scmp.eq.s32.totalorder %s28, 1
      %p135 = por %p133, %p134
      %p137 = scmp.ne.s32.totalorder %s122, %s136
      %p138 = scmp.eq.s32.totalorder %s28, 0
      %p139 = por %p137, %p138
      %s141 = sadd.s32 %s140, 1
      %p144 = scmp.eq.s32.totalorder %s22, 1
      %p145 = scmp.ne.s32.totalorder %s140, %s142
      %p146 = scmp.eq.s32.totalorder %s22, 0
      %p147 = por %p145, %p146
      %p148 = scmp.ne.s32.totalorder %s140, %s142
      %p149 = scmp.eq.s32.totalorder %s27, 1
      %p150 = por %p148, %p149
      %p151 = scmp.ne.s32.totalorder %s142, %s143
      %p152 = scmp.eq.s32.totalorder %s27, 0
      %p153 = por %p151, %p152
      %p154 = scmp.ne.s32.totalorder %s142, %s143
      %p155 = scmp.eq.s32.totalorder %s28, 1
      %p156 = por %p154, %p155
      %p158 = scmp.ne.s32.totalorder %s143, %s157
      %p159 = scmp.eq.s32.totalorder %s28, 0
      %p160 = por %p158, %p159
      %s162 = sadd.s32 %s161, 1
      %p165 = scmp.eq.s32.totalorder %s22, 1
      %p166 = scmp.ne.s32.totalorder %s161, %s163
      %p167 = scmp.eq.s32.totalorder %s22, 0
      %p168 = por %p166, %p167
      %p169 = scmp.ne.s32.totalorder %s161, %s163
      %p170 = scmp.eq.s32.totalorder %s27, 1
      %p171 = por %p169, %p170
      %p172 = scmp.ne.s32.totalorder %s163, %s164
      %p173 = scmp.eq.s32.totalorder %s27, 0
      %p174 = por %p172, %p173
      %p175 = scmp.ne.s32.totalorder %s163, %s164
      %p176 = scmp.eq.s32.totalorder %s28, 1
      %p177 = por %p175, %p176
      %p179 = scmp.ne.s32.totalorder %s164, %s178
      %p180 = scmp.eq.s32.totalorder %s28, 0
      %p181 = por %p179, %p180
      %s183 = sadd.s32 %s182, 1
      %p186 = scmp.eq.s32.totalorder %s22, 1
      %p187 = scmp.ne.s32.totalorder %s182, %s184
      %p188 = scmp.eq.s32.totalorder %s22, 0
      %p189 = por %p187, %p188
      %p190 = scmp.ne.s32.totalorder %s182, %s184
      %p191 = scmp.eq.s32.totalorder %s27, 1
      %p192 = por %p190, %p191
      %p193 = scmp.ne.s32.totalorder %s184, %s185
      %p194 = scmp.eq.s32.totalorder %s27, 0
      %p195 = por %p193, %p194
      %p196 = scmp.ne.s32.totalorder %s184, %s185
      %p197 = scmp.eq.s32.totalorder %s28, 1
      %p198 = por %p196, %p197
      %p200 = scmp.ne.s32.totalorder %s185, %s199
      %p201 = scmp.eq.s32.totalorder %s28, 0
      %p202 = por %p200, %p201
      %s204 = sadd.s32 %s203, 1
      %p207 = scmp.eq.s32.totalorder %s22, 1
      %p208 = scmp.ne.s32.totalorder %s203, %s205
      %p209 = scmp.eq.s32.totalorder %s22, 0
      %p210 = por %p208, %p209
      %p211 = scmp.ne.s32.totalorder %s203, %s205
      %p212 = scmp.eq.s32.totalorder %s27, 1
      %p213 = por %p211, %p212
      %p214 = scmp.ne.s32.totalorder %s205, %s206
      %p215 = scmp.eq.s32.totalorder %s27, 0
      %p216 = por %p214, %p215
      %p217 = scmp.ne.s32.totalorder %s205, %s206
      %p218 = scmp.eq.s32.totalorder %s28, 1
      %p219 = por %p217, %p218
      %p221 = scmp.ne.s32.totalorder %s206, %s220
      %p222 = scmp.eq.s32.totalorder %s28, 0
      %p223 = por %p221, %p222
      %s225 = sadd.s32 %s224, 1
      %p228 = scmp.eq.s32.totalorder %s22, 1
      %p229 = scmp.ne.s32.totalorder %s224, %s226
      %p230 = scmp.eq.s32.totalorder %s22, 0
      %p231 = por %p229, %p230
      %p232 = scmp.ne.s32.totalorder %s224, %s226
      %p233 = scmp.eq.s32.totalorder %s27, 1
      %p234 = por %p232, %p233
      %p235 = scmp.ne.s32.totalorder %s226, %s227
      %p236 = scmp.eq.s32.totalorder %s27, 0
      %p237 = por %p235, %p236
      %p238 = scmp.ne.s32.totalorder %s226, %s227
      %p239 = scmp.eq.s32.totalorder %s28, 1
      %p240 = por %p238, %p239
      %p242 = scmp.ne.s32.totalorder %s227, %s241
      %p243 = scmp.eq.s32.totalorder %s28, 0
      %p244 = por %p242, %p243
      %s246 = sadd.s32 %s245, 1
      %p249 = scmp.eq.s32.totalorder %s22, 1
      %p250 = scmp.ne.s32.totalorder %s245, %s247
      %p251 = scmp.eq.s32.totalorder %s22, 0
      %p252 = por %p250, %p251
      %p253 = scmp.ne.s32.totalorder %s245, %s247
      %p254 = scmp.eq.s32.totalorder %s27, 1
      %p255 = por %p253, %p254
      %p256 = scmp.ne.s32.totalorder %s247, %s248
      %p257 = scmp.eq.s32.totalorder %s27, 0
      %p258 = por %p256, %p257
      %p259 = scmp.ne.s32.totalorder %s247, %s248
      %p260 = scmp.eq.s32.totalorder %s28, 1
      %p261 = por %p259, %p260
      %p263 = scmp.ne.s32.totalorder %s248, %s262
      %p264 = scmp.eq.s32.totalorder %s28, 0
      %p265 = por %p263, %p264
      %s267 = sadd.s32 %s266, 1
      %p270 = scmp.eq.s32.totalorder %s22, 1
      %p271 = scmp.ne.s32.totalorder %s266, %s268
      %p272 = scmp.eq.s32.totalorder %s22, 0
      %p273 = por %p271, %p272
      %p274 = scmp.ne.s32.totalorder %s266, %s268
      %p275 = scmp.eq.s32.totalorder %s27, 1
      %p276 = por %p274, %p275
      %p277 = scmp.ne.s32.totalorder %s268, %s269
      %p278 = scmp.eq.s32.totalorder %s27, 0
      %p279 = por %p277, %p278
      %p280 = scmp.ne.s32.totalorder %s268, %s269
      %p281 = scmp.eq.s32.totalorder %s28, 1
      %p282 = por %p280, %p281
      %p284 = scmp.ne.s32.totalorder %s269, %s283
      %p285 = scmp.eq.s32.totalorder %s28, 0
      %p286 = por %p284, %p285
      %s288 = sadd.s32 %s287, 1
      %p291 = scmp.eq.s32.totalorder %s22, 1
      %p292 = scmp.ne.s32.totalorder %s287, %s289
      %p293 = scmp.eq.s32.totalorder %s22, 0
      %p294 = por %p292, %p293
      %p295 = scmp.ne.s32.totalorder %s287, %s289
      %p296 = scmp.eq.s32.totalorder %s27, 1
      %p297 = por %p295, %p296
      %p298 = scmp.ne.s32.totalorder %s289, %s290
      %p299 = scmp.eq.s32.totalorder %s27, 0
      %p300 = por %p298, %p299
      %p301 = scmp.ne.s32.totalorder %s289, %s290
      %p302 = scmp.eq.s32.totalorder %s28, 1
      %p303 = por %p301, %p302
      %p305 = scmp.ne.s32.totalorder %s290, %s304
      %p306 = scmp.eq.s32.totalorder %s28, 0
      %p307 = por %p305, %p306
      %s308 = ssub.s32 %s22, %s29
      %p309 = scmp.eq.s32.totalorder %s308, 0
      %s311 = sadd.s32 %s310, 1
      %s312 = scalar_select %p309, %s310, %s311
      %p315 = pneg %p309
      %p316 = scmp.eq.s32.totalorder %s22, 1
      %p317 = por %p315, %p316
      %p318 = scmp.ne.s32.totalorder %s310, %s313
      %p319 = scmp.eq.s32.totalorder %s22, 0
      %p320 = por %p318, %p319
      %p321 = scmp.ne.s32.totalorder %s310, %s313
      %p322 = scmp.eq.s32.totalorder %s27, 1
      %p323 = por %p321, %p322
      %p324 = scmp.ne.s32.totalorder %s313, %s314
      %p325 = scmp.eq.s32.totalorder %s27, 0
      %p326 = por %p324, %p325
      %p327 = scmp.ne.s32.totalorder %s313, %s314
      %p328 = scmp.eq.s32.totalorder %s28, 1
      %p329 = por %p327, %p328
      %p331 = scmp.ne.s32.totalorder %s314, %s330
      %p332 = scmp.eq.s32.totalorder %s28, 0
      %p333 = por %p331, %p332
      %p334 = scmp.le.s32.totalorder 1, %s22
      %p335 = scmp.lt.s32.totalorder %s22, 3
      %p336 = pnand %p334, %p335
      %p337 = pneg %p336
      // Predicated region
      $region9: #{tpu_custom_call.1} parent=5 // pred_check
        _
      $region10: #{tpu_custom_call.1} parent=5 // pred_check_branch
        %339 = sbr.rel (%p336) target = $region12
      $region11: #{tpu_custom_call.1} parent=5 // pred_region
        %s340 = ssub.s32 %s22, 1
        // Predicated region
        $region13: #{tpu_custom_call.1} parent=11 // pred_check
          %p341 = pneg %p69
        $region14: #{tpu_custom_call.1} parent=11 // pred_check_branch
          %343 = sbr.rel (%p341) target = $region16
        $region15: #{tpu_custom_call.1} parent=11 // pred_region
          _
        $region16: #{tpu_custom_call.1} parent=11 // pred_fallthru
          _
        // Predicated region
        $region17: #{tpu_custom_call.1} parent=11 // pred_check
          %p344 = pneg %p90
        $region18: #{tpu_custom_call.1} parent=11 // pred_check_branch
          %346 = sbr.rel (%p344) target = $region20
        $region19: #{tpu_custom_call.1} parent=11 // pred_region
          _
        $region20: #{tpu_custom_call.1} parent=11 // pred_fallthru
          _
        // Predicated region
        $region21: #{tpu_custom_call.1} parent=11 // pred_check
          %p347 = pneg %p111
        $region22: #{tpu_custom_call.1} parent=11 // pred_check_branch
          %349 = sbr.rel (%p347) target = $region24
        $region23: #{tpu_custom_call.1} parent=11 // pred_region
          _
        $region24: #{tpu_custom_call.1} parent=11 // pred_fallthru
          _
        // Predicated region
        $region25: #{tpu_custom_call.1} parent=11 // pred_check
          %p350 = pneg %p132
        $region26: #{tpu_custom_call.1} parent=11 // pred_check_branch
          %352 = sbr.rel (%p350) target = $region28
        $region27: #{tpu_custom_call.1} parent=11 // pred_region
          _
        $region28: #{tpu_custom_call.1} parent=11 // pred_fallthru
          _
        // Predicated region
        $region29: #{tpu_custom_call.1} parent=11 // pred_check
          %p353 = pneg %p153
        $region30: #{tpu_custom_call.1} parent=11 // pred_check_branch
          %355 = sbr.rel (%p353) target = $region32
        $region31: #{tpu_custom_call.1} parent=11 // pred_region
          _
        $region32: #{tpu_custom_call.1} parent=11 // pred_fallthru
          _
        // Predicated region
        $region33: #{tpu_custom_call.1} parent=11 // pred_check
          %p356 = pneg %p174
        $region34: #{tpu_custom_call.1} parent=11 // pred_check_branch
          %358 = sbr.rel (%p356) target = $region36
        $region35: #{tpu_custom_call.1} parent=11 // pred_region
          _
        $region36: #{tpu_custom_call.1} parent=11 // pred_fallthru
          _
        // Predicated region
        $region37: #{tpu_custom_call.1} parent=11 // pred_check
          %p359 = pneg %p195
        $region38: #{tpu_custom_call.1} parent=11 // pred_check_branch
          %361 = sbr.rel (%p359) target = $region40
        $region39: #{tpu_custom_call.1} parent=11 // pred_region
          _
        $region40: #{tpu_custom_call.1} parent=11 // pred_fallthru
          _
        // Predicated region
        $region41: #{tpu_custom_call.1} parent=11 // pred_check
          %p362 = pneg %p216
        $region42: #{tpu_custom_call.1} parent=11 // pred_check_branch
          %364 = sbr.rel (%p362) target = $region44
        $region43: #{tpu_custom_call.1} parent=11 // pred_region
          _
        $region44: #{tpu_custom_call.1} parent=11 // pred_fallthru
          _
        // Predicated region
        $region45: #{tpu_custom_call.1} parent=11 // pred_check
          %p365 = pneg %p237
        $region46: #{tpu_custom_call.1} parent=11 // pred_check_branch
          %367 = sbr.rel (%p365) target = $region48
        $region47: #{tpu_custom_call.1} parent=11 // pred_region
          _
        $region48: #{tpu_custom_call.1} parent=11 // pred_fallthru
          _
        // Predicated region
        $region49: #{tpu_custom_call.1} parent=11 // pred_check
          %p368 = pneg %p258
        $region50: #{tpu_custom_call.1} parent=11 // pred_check_branch
          %370 = sbr.rel (%p368) target = $region52
        $region51: #{tpu_custom_call.1} parent=11 // pred_region
          _
        $region52: #{tpu_custom_call.1} parent=11 // pred_fallthru
          _
        // Predicated region
        $region53: #{tpu_custom_call.1} parent=11 // pred_check
          %p371 = pneg %p279
        $region54: #{tpu_custom_call.1} parent=11 // pred_check_branch
          %373 = sbr.rel (%p371) target = $region56
        $region55: #{tpu_custom_call.1} parent=11 // pred_region
          _
        $region56: #{tpu_custom_call.1} parent=11 // pred_fallthru
          _
        // Predicated region
        $region57: #{tpu_custom_call.1} parent=11 // pred_check
          %p374 = pneg %p300
        $region58: #{tpu_custom_call.1} parent=11 // pred_check_branch
          %376 = sbr.rel (%p374) target = $region60
        $region59: #{tpu_custom_call.1} parent=11 // pred_region
          _
        $region60: #{tpu_custom_call.1} parent=11 // pred_fallthru
          _
      $region12: #{tpu_custom_call.1} parent=5 // pred_fallthru
        _
      %p377 = scmp.lt.s32.totalorder %s22, 2
      // Predicated region
      $region61: #{tpu_custom_call.1} parent=5 // pred_check
        %p378 = pneg %p377
      $region62: #{tpu_custom_call.1} parent=5 // pred_check_branch
        %380 = sbr.rel (%p378) target = $region64
      $region63: #{tpu_custom_call.1} parent=5 // pred_region
        // Predicated region
        $region65: #{tpu_custom_call.1} parent=63 // pred_check
          %p381 = pneg %p42
        $region66: #{tpu_custom_call.1} parent=63 // pred_check_branch
          %383 = sbr.rel (%p381) target = $region68
        $region67: #{tpu_custom_call.1} parent=63 // pred_region
          %p384 = scmp.lt.s32.totalorder %s22, 1
          %s385 = scalar_select %p384, %s22, 1
          %s386 = smul.addr %s385, 8
          %s387 = scalar_lea.vmem %s0, %s386
        $region68: #{tpu_custom_call.1} parent=63 // pred_fallthru
          _
      $region64: #{tpu_custom_call.1} parent=5 // pred_fallthru
        _
      %p388 = scmp.le.s32.totalorder 1, %s22
      %p389 = scmp.lt.s32.totalorder %s22, 3
      %p390 = pnand %p388, %p389
      %p391 = pneg %p390
      // Predicated region
      $region69: #{tpu_custom_call.1} parent=5 // pred_check
        _
      $region70: #{tpu_custom_call.1} parent=5 // pred_check_branch
        %393 = sbr.rel (%p390) target = $region72
      $region71: #{tpu_custom_call.1} parent=5 // pred_region
        %s394 = ssub.s32 %s22, 1
        %p395 = scmp.lt.s32.totalorder %s27, 1
        %s396 = scalar_select %p395, %s27, 1
        %s397 = smul.addr %s396, 8
        %s398 = scalar_lea.vmem %s0, %s397
        %p399 = pneg %p48
        %p400 = pneg %p45
        %p401 = pneg %p69
        %p402 = pneg %p66
        %p403 = pneg %p90
        %p404 = pneg %p87
        %p405 = pneg %p111
        %p406 = pneg %p108
        %p407 = pneg %p132
        %p408 = pneg %p129
        %p409 = pneg %p153
        %p410 = pneg %p150
        %p411 = pneg %p174
        %p412 = pneg %p171
        %p413 = pneg %p195
        %p414 = pneg %p192
        %p415 = pneg %p216
        %p416 = pneg %p213
        %p417 = pneg %p237
        %p418 = pneg %p234
        %p419 = pneg %p258
        %p420 = pneg %p255
        %p421 = pneg %p279
        %p422 = pneg %p276
        %p423 = pneg %p300
        %p424 = pneg %p297
        %p425 = pneg %p326
        %p426 = pneg %p323
        %s427 = sand.u32 %s313, 1
        %s428 = scalar_lea.sflag [#allocation3], %s427
        %s429 = sand.u32 %s313, 1
        %s430 = smul.addr %s429, 8
        %s431 = scalar_lea.vmem [#allocation2], %s430
        %p432 = scmp.lt.s32.totalorder %s27, 1
        %s433 = scalar_select %p432, %s27, 1
        %s434 = smul.addr %s433, 8
        %s435 = scalar_lea.vmem %s0, %s434
        %v437 = vld [vmem:[%s435] sm:$0xff]
        %v438 = vpack.c.bf16 %v437, %v437
        %v439 = vld [vmem:[%s1] sm:$0xf]
        %v440 = vld [vmem:[%s1 + $0x4] sm:$0xf]
        %v441 = vld [vmem:[%s1 + $0x8] sm:$0xf]
        %v442 = vld [vmem:[%s1 + $0xc] sm:$0xf]
        %v443 = vld [vmem:[%s2] sm:$0x1]
        %v445 = vlaneseq
        %v446 = vshrl.u32 %v445, 7
        %v447 = vsub.s32 0, %v446
        %v448 = vrot.slane %v443, %v447
        %v454 = vunpack.c.l.b16 %v439
        %v455 = vunpack.c.l.b16 %v440
        %v456 = vunpack.c.l.b16 %v441
        %v457 = vunpack.c.l.b16 %v442
        %v458 = vpack.c.b16 %v455, %v454
        %v459 = vpack.c.b16 %v457, %v456
        %vm462 = vcmask 261120
        %v464 = vsel %vm462, %v438, 0
        %466 = vmatprep.subr.bf16.mxu0 0
        %467 = vmatpush1.bf16.msra.mxu0 %v458
        %468 = vmatprep.subr.bf16.mxu0 0
        %469 = vmatpush1.bf16.msra.mxu0 %v459
        %470 = vmatprep.subr.bf16.mxu0 0
        %471 = vmatpush1.bf16.msra.mxu0 0
        %472 = vmatprep.subr.bf16.mxu0 0
        %473 = vmatpush1.bf16.msra.mxu0 0
        %474 = vmatprep.subr.bf16.mxu0 0
        %475 = vmatpush1.bf16.msra.mxu0 0
        %476 = vmatprep.subr.bf16.mxu0 0
        %477 = vmatpush1.bf16.msra.mxu0 0
        %478 = vmatprep.subr.bf16.mxu0 0
        %479 = vmatpush1.bf16.msra.mxu0 0
        %480 = vmatprep.subr.bf16.mxu0 0
        %481 = vmatpush1.bf16.msra.mxu0 0
        %482 = vmatprep.subr.bf16.mxu0 0
        %483 = vmatpush1.bf16.msra.mxu0 0
        %484 = vmatprep.subr.bf16.mxu0 0
        %485 = vmatpush1.bf16.msra.mxu0 0
        %486 = vmatprep.subr.bf16.mxu0 0
        %487 = vmatpush1.bf16.msra.mxu0 0
        %488 = vmatprep.subr.bf16.mxu0 0
        %489 = vmatpush1.bf16.msra.mxu0 0
        %490 = vmatprep.subr.bf16.mxu0 0
        %491 = vmatpush1.bf16.msra.mxu0 0
        %492 = vmatprep.subr.bf16.mxu0 0
        %493 = vmatpush1.bf16.msra.mxu0 0
        %494 = vmatprep.subr.bf16.mxu0 0
        %495 = vmatpush1.bf16.msra.mxu0 0
        %496 = vmatprep.subr.bf16.mxu0 0
        %497 = vmatpush1.bf16.msra.mxu0 0
        %498 = vmatprep.mubr.bf16.mxu0 0
        %499 = vmatmul.mubr.bf16.gmra.mrb[0].mxu0 %v464
        %v500 = vpop.f32.mrb[0].mxu0
        %v501 = vadd.f32 %v448, %v500
        %v502 = vpop.f32.mrb[0].mxu0
        %v503 = vpop.f32.mrb[0].mxu0
        %v504 = vpop.f32.mrb[0].mxu0
        %505 = vdwg.mxu0
        %507 = vrot.lane.b32.xlu0 %v501, 120
        %v508 = vpop.permute.xlu0 %507
        %510 = vrot.lane.b32.xlu0 %v501, 112
        %v511 = vpop.permute.xlu0 %510
        %513 = vrot.lane.b32.xlu0 %v501, 104
        %v514 = vpop.permute.xlu0 %513
        %v516 = vcombine.low %v501, %v511
        %v517 = vcombine.high %v501, %v511
        %v519 = vunpack.c.l.s4 1983009808
        %v520 = vunpack.c.0.s8 %v519
        %v521 = vlaneseq
        %v522 = vshrl.u32 %v521, 7
        %v523 = vsub.s32 %v520, %v522
        %v524 = vrot.slane %v516, %v523
        %v526 = vunpack.c.l.s4 1983009808
        %v527 = vunpack.c.0.s8 %v526
        %v528 = vlaneseq
        %v529 = vshrl.u32 %v528, 7
        %v530 = vsub.s32 %v527, %v529
        %v531 = vrot.slane %v517, %v530
        %v532 = vcombine.low %v508, %v514
        %v533 = vcombine.high %v508, %v514
        %v535 = vunpack.c.l.s4 1983009808
        %v536 = vunpack.c.0.s8 %v535
        %v537 = vlaneseq
        %v538 = vshrl.u32 %v537, 7
        %v539 = vsub.s32 %v536, %v538
        %v540 = vrot.slane %v532, %v539
        %v542 = vunpack.c.l.s4 1983009808
        %v543 = vunpack.c.0.s8 %v542
        %v544 = vlaneseq
        %v545 = vshrl.u32 %v544, 7
        %v546 = vsub.s32 %v543, %v545
        %v547 = vrot.slane %v533, %v546
        %v548 = vcombine.low %v524, %v540
        %v549 = vcombine.high %v524, %v540
        %v551 = vunpack.c.l.s4 1934713408
        %v552 = vunpack.c.0.s8 %v551
        %v553 = vlaneseq
        %v554 = vshrl.u32 %v553, 7
        %v555 = vsub.s32 %v552, %v554
        %v556 = vrot.slane %v548, %v555
        %v558 = vunpack.c.l.s4 1934713408
        %v559 = vunpack.c.0.s8 %v558
        %v560 = vlaneseq
        %v561 = vshrl.u32 %v560, 7
        %v562 = vsub.s32 %v559, %v561
        %v563 = vrot.slane %v549, %v562
        %v564 = vcombine.low %v531, %v547
        %v565 = vcombine.high %v531, %v547
        %v567 = vunpack.c.l.s4 1934713408
        %v568 = vunpack.c.0.s8 %v567
        %v569 = vlaneseq
        %v570 = vshrl.u32 %v569, 7
        %v571 = vsub.s32 %v568, %v570
        %v572 = vrot.slane %v564, %v571
        %v574 = vunpack.c.l.s4 1934713408
        %v575 = vunpack.c.0.s8 %v574
        %v576 = vlaneseq
        %v577 = vshrl.u32 %v576, 7
        %v578 = vsub.s32 %v575, %v577
        %v579 = vrot.slane %v565, %v578
        %v580 = vcombine.high %v556, 0.0
        %v581 = vcombine.high %v563, 0.0
        %v582 = vcombine.high %v572, 0.0
        %v583 = vcombine.high %v579, 0.0
        %v584 = vcombine.low %v556, %v563
        %v586 = vunpack.c.l.s4 1983009808
        %v587 = vunpack.c.0.s8 %v586
        %v588 = vlaneseq
        %v589 = vshrl.u32 %v588, 7
        %v590 = vsub.s32 %v587, %v589
        %v591 = vrot.slane %v584, %v590
        %v592 = vcombine.low %v580, %v581
        %v594 = vunpack.c.l.s4 1983009808
        %v595 = vunpack.c.0.s8 %v594
        %v596 = vlaneseq
        %v597 = vshrl.u32 %v596, 7
        %v598 = vsub.s32 %v595, %v597
        %v599 = vrot.slane %v592, %v598
        %v600 = vcombine.low %v572, %v579
        %v602 = vunpack.c.l.s4 1983009808
        %v603 = vunpack.c.0.s8 %v602
        %v604 = vlaneseq
        %v605 = vshrl.u32 %v604, 7
        %v606 = vsub.s32 %v603, %v605
        %v607 = vrot.slane %v600, %v606
        %v608 = vcombine.low %v582, %v583
        %v610 = vunpack.c.l.s4 1983009808
        %v611 = vunpack.c.0.s8 %v610
        %v612 = vlaneseq
        %v613 = vshrl.u32 %v612, 7
        %v614 = vsub.s32 %v611, %v613
        %v615 = vrot.slane %v608, %v614
        %v616 = vcombine.low %v591, %v599
        %v617 = vcombine.high %v591, %v599
        %v619 = vunpack.c.l.s4 1934713408
        %v620 = vunpack.c.0.s8 %v619
        %v621 = vlaneseq
        %v622 = vshrl.u32 %v621, 7
        %v623 = vsub.s32 %v620, %v622
        %v624 = vrot.slane %v616, %v623
        %v626 = vunpack.c.l.s4 1934713408
        %v627 = vunpack.c.0.s8 %v626
        %v628 = vlaneseq
        %v629 = vshrl.u32 %v628, 7
        %v630 = vsub.s32 %v627, %v629
        %v631 = vrot.slane %v617, %v630
        %v632 = vcombine.low %v607, %v615
        %v633 = vcombine.high %v607, %v615
        %v635 = vunpack.c.l.s4 1934713408
        %v636 = vunpack.c.0.s8 %v635
        %v637 = vlaneseq
        %v638 = vshrl.u32 %v637, 7
        %v639 = vsub.s32 %v636, %v638
        %v640 = vrot.slane %v632, %v639
        %v642 = vunpack.c.l.s4 1934713408
        %v643 = vunpack.c.0.s8 %v642
        %v644 = vlaneseq
        %v645 = vshrl.u32 %v644, 7
        %v646 = vsub.s32 %v643, %v645
        %v647 = vrot.slane %v633, %v646
        %v648 = vcombine.low %v624, %v640
        %v649 = vcombine.high %v624, %v640
        %v650 = vcombine.low %v631, %v647
        %v651 = vcombine.high %v631, %v647
        %v652 = vpack.c.bf16 %v648, %v648
        %v653 = vpack.c.bf16 %v649, %v649
        %v654 = vpack.c.bf16 %v650, %v650
        %v655 = vpack.c.bf16 %v651, %v651
        %656 = vrot.lane.b32.xlu0 %v501, 96
        %v657 = vpop.permute.xlu0 %656
        %658 = vrot.lane.b32.xlu0 %v508, 96
        %v659 = vpop.permute.xlu0 %658
        %660 = vrot.lane.b32.xlu0 %v511, 96
        %v661 = vpop.permute.xlu0 %660
        %662 = vrot.lane.b32.xlu0 %v514, 96
        %v663 = vpop.permute.xlu0 %662
        %v668 = vcombine.low %v657, %v661
        %v669 = vcombine.high %v657, %v661
        %v671 = vunpack.c.l.s4 1983009808
        %v672 = vunpack.c.0.s8 %v671
        %v673 = vlaneseq
        %v674 = vshrl.u32 %v673, 7
        %v675 = vsub.s32 %v672, %v674
        %v676 = vrot.slane %v668, %v675
        %v678 = vunpack.c.l.s4 1983009808
        %v679 = vunpack.c.0.s8 %v678
        %v680 = vlaneseq
        %v681 = vshrl.u32 %v680, 7
        %v682 = vsub.s32 %v679, %v681
        %v683 = vrot.slane %v669, %v682
        %v684 = vcombine.low %v659, %v663
        %v685 = vcombine.high %v659, %v663
        %v687 = vunpack.c.l.s4 1983009808
        %v688 = vunpack.c.0.s8 %v687
        %v689 = vlaneseq
        %v690 = vshrl.u32 %v689, 7
        %v691 = vsub.s32 %v688, %v690
        %v692 = vrot.slane %v684, %v691
        %v694 = vunpack.c.l.s4 1983009808
        %v695 = vunpack.c.0.s8 %v694
        %v696 = vlaneseq
        %v697 = vshrl.u32 %v696, 7
        %v698 = vsub.s32 %v695, %v697
        %v699 = vrot.slane %v685, %v698
        %v700 = vcombine.low %v676, %v692
        %v701 = vcombine.high %v676, %v692
        %v703 = vunpack.c.l.s4 1934713408
        %v704 = vunpack.c.0.s8 %v703
        %v705 = vlaneseq
        %v706 = vshrl.u32 %v705, 7
        %v707 = vsub.s32 %v704, %v706
        %v708 = vrot.slane %v700, %v707
        %v710 = vunpack.c.l.s4 1934713408
        %v711 = vunpack.c.0.s8 %v710
        %v712 = vlaneseq
        %v713 = vshrl.u32 %v712, 7
        %v714 = vsub.s32 %v711, %v713
        %v715 = vrot.slane %v701, %v714
        %v716 = vcombine.low %v683, %v699
        %v717 = vcombine.high %v683, %v699
        %v719 = vunpack.c.l.s4 1934713408
        %v720 = vunpack.c.0.s8 %v719
        %v721 = vlaneseq
        %v722 = vshrl.u32 %v721, 7
        %v723 = vsub.s32 %v720, %v722
        %v724 = vrot.slane %v716, %v723
        %v726 = vunpack.c.l.s4 1934713408
        %v727 = vunpack.c.0.s8 %v726
        %v728 = vlaneseq
        %v729 = vshrl.u32 %v728, 7
        %v730 = vsub.s32 %v727, %v729
        %v731 = vrot.slane %v717, %v730
        %v732 = vcombine.high %v708, 0.0
        %v733 = vcombine.high %v715, 0.0
        %v734 = vcombine.high %v724, 0.0
        %v735 = vcombine.high %v731, 0.0
        %v736 = vcombine.low %v708, %v715
        %v738 = vunpack.c.l.s4 1983009808
        %v739 = vunpack.c.0.s8 %v738
        %v740 = vlaneseq
        %v741 = vshrl.u32 %v740, 7
        %v742 = vsub.s32 %v739, %v741
        %v743 = vrot.slane %v736, %v742
        %v744 = vcombine.low %v732, %v733
        %v746 = vunpack.c.l.s4 1983009808
        %v747 = vunpack.c.0.s8 %v746
        %v748 = vlaneseq
        %v749 = vshrl.u32 %v748, 7
        %v750 = vsub.s32 %v747, %v749
        %v751 = vrot.slane %v744, %v750
        %v752 = vcombine.low %v724, %v731
        %v754 = vunpack.c.l.s4 1983009808
        %v755 = vunpack.c.0.s8 %v754
        %v756 = vlaneseq
        %v757 = vshrl.u32 %v756, 7
        %v758 = vsub.s32 %v755, %v757
        %v759 = vrot.slane %v752, %v758
        %v760 = vcombine.low %v734, %v735
        %v762 = vunpack.c.l.s4 1983009808
        %v763 = vunpack.c.0.s8 %v762
        %v764 = vlaneseq
        %v765 = vshrl.u32 %v764, 7
        %v766 = vsub.s32 %v763, %v765
        %v767 = vrot.slane %v760, %v766
        %v768 = vcombine.low %v743, %v751
        %v769 = vcombine.high %v743, %v751
        %v771 = vunpack.c.l.s4 1934713408
        %v772 = vunpack.c.0.s8 %v771
        %v773 = vlaneseq
        %v774 = vshrl.u32 %v773, 7
        %v775 = vsub.s32 %v772, %v774
        %v776 = vrot.slane %v768, %v775
        %v778 = vunpack.c.l.s4 1934713408
        %v779 = vunpack.c.0.s8 %v778
        %v780 = vlaneseq
        %v781 = vshrl.u32 %v780, 7
        %v782 = vsub.s32 %v779, %v781
        %v783 = vrot.slane %v769, %v782
        %v784 = vcombine.low %v759, %v767
        %v785 = vcombine.high %v759, %v767
        %v787 = vunpack.c.l.s4 1934713408
        %v788 = vunpack.c.0.s8 %v787
        %v789 = vlaneseq
        %v790 = vshrl.u32 %v789, 7
        %v791 = vsub.s32 %v788, %v790
        %v792 = vrot.slane %v784, %v791
        %v794 = vunpack.c.l.s4 1934713408
        %v795 = vunpack.c.0.s8 %v794
        %v796 = vlaneseq
        %v797 = vshrl.u32 %v796, 7
        %v798 = vsub.s32 %v795, %v797
        %v799 = vrot.slane %v785, %v798
        %v800 = vcombine.low %v776, %v792
        %v801 = vcombine.high %v776, %v792
        %v802 = vcombine.low %v783, %v799
        %v803 = vcombine.high %v783, %v799
        %v804 = vpack.c.bf16 %v800, %v800
        %v805 = vpack.c.bf16 %v801, %v801
        %v806 = vpack.c.bf16 %v802, %v802
        %v807 = vpack.c.bf16 %v803, %v803
        %808 = vrot.lane.b32.xlu0 %v501, 64
        %v809 = vpop.permute.xlu0 %808
        %810 = vrot.lane.b32.xlu0 %v508, 64
        %v811 = vpop.permute.xlu0 %810
        %812 = vrot.lane.b32.xlu0 %v511, 64
        %v813 = vpop.permute.xlu0 %812
        %814 = vrot.lane.b32.xlu0 %v514, 64
        %v815 = vpop.permute.xlu0 %814
        %v820 = vcombine.low %v809, %v813
        %v821 = vcombine.high %v809, %v813
        %v823 = vunpack.c.l.s4 1983009808
        %v824 = vunpack.c.0.s8 %v823
        %v825 = vlaneseq
        %v826 = vshrl.u32 %v825, 7
        %v827 = vsub.s32 %v824, %v826
        %v828 = vrot.slane %v820, %v827
        %v830 = vunpack.c.l.s4 1983009808
        %v831 = vunpack.c.0.s8 %v830
        %v832 = vlaneseq
        %v833 = vshrl.u32 %v832, 7
        %v834 = vsub.s32 %v831, %v833
        %v835 = vrot.slane %v821, %v834
        %v836 = vcombine.low %v811, %v815
        %v837 = vcombine.high %v811, %v815
        %v839 = vunpack.c.l.s4 1983009808
        %v840 = vunpack.c.0.s8 %v839
        %v841 = vlaneseq
        %v842 = vshrl.u32 %v841, 7
        %v843 = vsub.s32 %v840, %v842
        %v844 = vrot.slane %v836, %v843
        %v846 = vunpack.c.l.s4 1983009808
        %v847 = vunpack.c.0.s8 %v846
        %v848 = vlaneseq
        %v849 = vshrl.u32 %v848, 7
        %v850 = vsub.s32 %v847, %v849
        %v851 = vrot.slane %v837, %v850
        %v852 = vcombine.low %v828, %v844
        %v853 = vcombine.high %v828, %v844
        %v855 = vunpack.c.l.s4 1934713408
        %v856 = vunpack.c.0.s8 %v855
        %v857 = vlaneseq
        %v858 = vshrl.u32 %v857, 7
        %v859 = vsub.s32 %v856, %v858
        %v860 = vrot.slane %v852, %v859
        %v862 = vunpack.c.l.s4 1934713408
        %v863 = vunpack.c.0.s8 %v862
        %v864 = vlaneseq
        %v865 = vshrl.u32 %v864, 7
        %v866 = vsub.s32 %v863, %v865
        %v867 = vrot.slane %v853, %v866
        %v868 = vcombine.low %v835, %v851
        %v869 = vcombine.high %v835, %v851
        %v871 = vunpack.c.l.s4 1934713408
        %v872 = vunpack.c.0.s8 %v871
        %v873 = vlaneseq
        %v874 = vshrl.u32 %v873, 7
        %v875 = vsub.s32 %v872, %v874
        %v876 = vrot.slane %v868, %v875
        %v878 = vunpack.c.l.s4 1934713408
        %v879 = vunpack.c.0.s8 %v878
        %v880 = vlaneseq
        %v881 = vshrl.u32 %v880, 7
        %v882 = vsub.s32 %v879, %v881
        %v883 = vrot.slane %v869, %v882
        %v884 = vcombine.high %v860, 0.0
        %v885 = vcombine.high %v867, 0.0
        %v886 = vcombine.high %v876, 0.0
        %v887 = vcombine.high %v883, 0.0
        %v888 = vcombine.low %v860, %v867
        %v890 = vunpack.c.l.s4 1983009808
        %v891 = vunpack.c.0.s8 %v890
        %v892 = vlaneseq
        %v893 = vshrl.u32 %v892, 7
        %v894 = vsub.s32 %v891, %v893
        %v895 = vrot.slane %v888, %v894
        %v896 = vcombine.low %v884, %v885
        %v898 = vunpack.c.l.s4 1983009808
        %v899 = vunpack.c.0.s8 %v898
        %v900 = vlaneseq
        %v901 = vshrl.u32 %v900, 7
        %v902 = vsub.s32 %v899, %v901
        %v903 = vrot.slane %v896, %v902
        %v904 = vcombine.low %v876, %v883
        %v906 = vunpack.c.l.s4 1983009808
        %v907 = vunpack.c.0.s8 %v906
        %v908 = vlaneseq
        %v909 = vshrl.u32 %v908, 7
        %v910 = vsub.s32 %v907, %v909
        %v911 = vrot.slane %v904, %v910
        %v912 = vcombine.low %v886, %v887
        %v914 = vunpack.c.l.s4 1983009808
        %v915 = vunpack.c.0.s8 %v914
        %v916 = vlaneseq
        %v917 = vshrl.u32 %v916, 7
        %v918 = vsub.s32 %v915, %v917
        %v919 = vrot.slane %v912, %v918
        %v920 = vcombine.low %v895, %v903
        %v921 = vcombine.high %v895, %v903
        %v923 = vunpack.c.l.s4 1934713408
        %v924 = vunpack.c.0.s8 %v923
        %v925 = vlaneseq
        %v926 = vshrl.u32 %v925, 7
        %v927 = vsub.s32 %v924, %v926
        %v928 = vrot.slane %v920, %v927
        %v930 = vunpack.c.l.s4 1934713408
        %v931 = vunpack.c.0.s8 %v930
        %v932 = vlaneseq
        %v933 = vshrl.u32 %v932, 7
        %v934 = vsub.s32 %v931, %v933
        %v935 = vrot.slane %v921, %v934
        %v936 = vcombine.low %v911, %v919
        %v937 = vcombine.high %v911, %v919
        %v939 = vunpack.c.l.s4 1934713408
        %v940 = vunpack.c.0.s8 %v939
        %v941 = vlaneseq
        %v942 = vshrl.u32 %v941, 7
        %v943 = vsub.s32 %v940, %v942
        %v944 = vrot.slane %v936, %v943
        %v946 = vunpack.c.l.s4 1934713408
        %v947 = vunpack.c.0.s8 %v946
        %v948 = vlaneseq
        %v949 = vshrl.u32 %v948, 7
        %v950 = vsub.s32 %v947, %v949
        %v951 = vrot.slane %v937, %v950
        %v952 = vcombine.low %v928, %v944
        %v953 = vcombine.high %v928, %v944
        %v954 = vcombine.low %v935, %v951
        %v955 = vcombine.high %v935, %v951
        %v956 = vpack.c.bf16 %v952, %v952
        %v957 = vpack.c.bf16 %v953, %v953
        %v958 = vpack.c.bf16 %v954, %v954
        %v959 = vpack.c.bf16 %v955, %v955
        %vm960 = vcmask 64512
        %v962 = vsel %vm960, %v652, 0
        %v965 = vsel %vm960, %v804, 0
        %967 = vmatprep.subr.bf16.mxu0 0
        %968 = vmatpush1.bf16.xpose.msra.mxu0 %v965
        %969 = vmatprep.subr.bf16.mxu0 0
        %970 = vmatpush1.bf16.xpose.msra.mxu0 0
        %971 = vmatprep.subr.bf16.mxu0 0
        %972 = vmatpush1.bf16.xpose.msra.mxu0 0
        %973 = vmatprep.subr.bf16.mxu0 0
        %974 = vmatpush1.bf16.xpose.msra.mxu0 0
        %975 = vmatprep.subr.bf16.mxu0 0
        %976 = vmatpush1.bf16.xpose.msra.mxu0 0
        %977 = vmatprep.subr.bf16.mxu0 0
        %978 = vmatpush1.bf16.xpose.msra.mxu0 0
        %979 = vmatprep.subr.bf16.mxu0 0
        %980 = vmatpush1.bf16.xpose.msra.mxu0 0
        %981 = vmatprep.subr.bf16.mxu0 0
        %982 = vmatpush1.bf16.xpose.msra.mxu0 0
        %983 = vmatprep.subr.bf16.mxu0 0
        %984 = vmatpush1.bf16.xpose.msra.mxu0 0
        %985 = vmatprep.subr.bf16.mxu0 0
        %986 = vmatpush1.bf16.xpose.msra.mxu0 0
        %987 = vmatprep.subr.bf16.mxu0 0
        %988 = vmatpush1.bf16.xpose.msra.mxu0 0
        %989 = vmatprep.subr.bf16.mxu0 0
        %990 = vmatpush1.bf16.xpose.msra.mxu0 0
        %991 = vmatprep.subr.bf16.mxu0 0
        %992 = vmatpush1.bf16.xpose.msra.mxu0 0
        %993 = vmatprep.subr.bf16.mxu0 0
        %994 = vmatpush1.bf16.xpose.msra.mxu0 0
        %995 = vmatprep.subr.bf16.mxu0 0
        %996 = vmatpush1.bf16.xpose.msra.mxu0 0
        %997 = vmatprep.subr.bf16.mxu0 0
        %998 = vmatpush1.bf16.xpose.msra.mxu0 0
        %999 = vmatprep.mubr.bf16.mxu0 0
        %1000 = vmatmul.mubr.bf16.gmra.mrb[0].mxu0 %v962
        %v1001 = vpop.f32.mrb[0].mxu0
        %v1002 = vadd.f32 0.0, %v1001
        %v1003 = vpop.f32.mrb[0].mxu0
        %v1004 = vpop.f32.mrb[0].mxu0
        %v1005 = vpop.f32.mrb[0].mxu0
        %1006 = vdwg.mxu0
        %v1008 = vsel %vm960, %v653, 0
        %v1011 = vsel %vm960, %v805, 0
        %1013 = vmatprep.subr.bf16.mxu0 0
        %1014 = vmatpush1.bf16.xpose.msra.mxu0 %v1011
        %1015 = vmatprep.subr.bf16.mxu0 0
        %1016 = vmatpush1.bf16.xpose.msra.mxu0 0
        %1017 = vmatprep.subr.bf16.mxu0 0
        %1018 = vmatpush1.bf16.xpose.msra.mxu0 0
        %1019 = vmatprep.subr.bf16.mxu0 0
        %1020 = vmatpush1.bf16.xpose.msra.mxu0 0
        %1021 = vmatprep.subr.bf16.mxu0 0
        %1022 = vmatpush1.bf16.xpose.msra.mxu0 0
        %1023 = vmatprep.subr.bf16.mxu0 0
        %1024 = vmatpush1.bf16.xpose.msra.mxu0 0
        %1025 = vmatprep.subr.bf16.mxu0 0
        %1026 = vmatpush1.bf16.xpose.msra.mxu0 0
        %1027 = vmatprep.subr.bf16.mxu0 0
        %1028 = vmatpush1.bf16.xpose.msra.mxu0 0
        %1029 = vmatprep.subr.bf16.mxu0 0
        %1030 = vmatpush1.bf16.xpose.msra.mxu0 0
        %1031 = vmatprep.subr.bf16.mxu0 0
        %1032 = vmatpush1.bf16.xpose.msra.mxu0 0
        %1033 = vmatprep.subr.bf16.mxu0 0
        %1034 = vmatpush1.bf16.xpose.msra.mxu0 0
        %1035 = vmatprep.subr.bf16.mxu0 0
        %1036 = vmatpush1.bf16.xpose.msra.mxu0 0
        %1037 = vmatprep.subr.bf16.mxu0 0
        %1038 = vmatpush1.bf16.xpose.msra.mxu0 0
        %1039 = vmatprep.subr.bf16.mxu0 0
        %1040 = vmatpush1.bf16.xpose.msra.mxu0 0
        %1041 = vmatprep.subr.bf16.mxu0 0
        %1042 = vmatpush1.bf16.xpose.msra.mxu0 0
        %1043 = vmatprep.subr.bf16.mxu0 0
        %1044 = vmatpush1.bf16.xpose.msra.mxu0 0
        %1045 = vmatprep.mubr.bf16.mxu0 0
        %1046 = vmatmul.mubr.bf16.gmra.mrb[0].mxu0 %v1008
        %v1047 = vpop.f32.mrb[0].mxu0
        %v1048 = vadd.f32 0.0, %v1047
        %v1049 = vpop.f32.mrb[0].mxu0
        %v1050 = vpop.f32.mrb[0].mxu0
        %v1051 = vpop.f32.mrb[0].mxu0
        %1052 = vdwg.mxu0
        %v1054 = vsel %vm960, %v654, 0
        %v1057 = vsel %vm960, %v806, 0
        %1059 = vmatprep.subr.bf16.mxu0 0
        %1060 = vmatpush1.bf16.xpose.msra.mxu0 %v1057
        %1061 = vmatprep.subr.bf16.mxu0 0
        %1062 = vmatpush1.bf16.xpose.msra.mxu0 0
        %1063 = vmatprep.subr.bf16.mxu0 0
        %1064 = vmatpush1.bf16.xpose.msra.mxu0 0
        %1065 = vmatprep.subr.bf16.mxu0 0
        %1066 = vmatpush1.bf16.xpose.msra.mxu0 0
        %1067 = vmatprep.subr.bf16.mxu0 0
        %1068 = vmatpush1.bf16.xpose.msra.mxu0 0
        %1069 = vmatprep.subr.bf16.mxu0 0
        %1070 = vmatpush1.bf16.xpose.msra.mxu0 0
        %1071 = vmatprep.subr.bf16.mxu0 0
        %1072 = vmatpush1.bf16.xpose.msra.mxu0 0
        %1073 = vmatprep.subr.bf16.mxu0 0
        %1074 = vmatpush1.bf16.xpose.msra.mxu0 0
        %1075 = vmatprep.subr.bf16.mxu0 0
        %1076 = vmatpush1.bf16.xpose.msra.mxu0 0
        %1077 = vmatprep.subr.bf16.mxu0 0
        %1078 = vmatpush1.bf16.xpose.msra.mxu0 0
        %1079 = vmatprep.subr.bf16.mxu0 0
        %1080 = vmatpush1.bf16.xpose.msra.mxu0 0
        %1081 = vmatprep.subr.bf16.mxu0 0
        %1082 = vmatpush1.bf16.xpose.msra.mxu0 0
        %1083 = vmatprep.subr.bf16.mxu0 0
        %1084 = vmatpush1.bf16.xpose.msra.mxu0 0
        %1085 = vmatprep.subr.bf16.mxu0 0
        %1086 = vmatpush1.bf16.xpose.msra.mxu0 0
        %1087 = vmatprep.subr.bf16.mxu0 0
        %1088 = vmatpush1.bf16.xpose.msra.mxu0 0
        %1089 = vmatprep.subr.bf16.mxu0 0
        %1090 = vmatpush1.bf16.xpose.msra.mxu0 0
        %1091 = vmatprep.mubr.bf16.mxu0 0
        %1092 = vmatmul.mubr.bf16.gmra.mrb[0].mxu0 %v1054
        %v1093 = vpop.f32.mrb[0].mxu0
        %v1094 = vadd.f32 0.0, %v1093
        %v1095 = vpop.f32.mrb[0].mxu0
        %v1096 = vpop.f32.mrb[0].mxu0
        %v1097 = vpop.f32.mrb[0].mxu0
        %1098 = vdwg.mxu0
        %v1100 = vsel %vm960, %v655, 0
        %v1103 = vsel %vm960, %v807, 0
        %1105 = vmatprep.subr.bf16.mxu0 0
        %1106 = vmatpush1.bf16.xpose.msra.mxu0 %v1103
        %1107 = vmatprep.subr.bf16.mxu0 0
        %1108 = vmatpush1.bf16.xpose.msra.mxu0 0
        %1109 = vmatprep.subr.bf16.mxu0 0
        %1110 = vmatpush1.bf16.xpose.msra.mxu0 0
        %1111 = vmatprep.subr.bf16.mxu0 0
        %1112 = vmatpush1.bf16.xpose.msra.mxu0 0
        %1113 = vmatprep.subr.bf16.mxu0 0
        %1114 = vmatpush1.bf16.xpose.msra.mxu0 0
        %1115 = vmatprep.subr.bf16.mxu0 0
        %1116 = vmatpush1.bf16.xpose.msra.mxu0 0
        %1117 = vmatprep.subr.bf16.mxu0 0
        %1118 = vmatpush1.bf16.xpose.msra.mxu0 0
        %1119 = vmatprep.subr.bf16.mxu0 0
        %1120 = vmatpush1.bf16.xpose.msra.mxu0 0
        %1121 = vmatprep.subr.bf16.mxu0 0
        %1122 = vmatpush1.bf16.xpose.msra.mxu0 0
        %1123 = vmatprep.subr.bf16.mxu0 0
        %1124 = vmatpush1.bf16.xpose.msra.mxu0 0
        %1125 = vmatprep.subr.bf16.mxu0 0
        %1126 = vmatpush1.bf16.xpose.msra.mxu0 0
        %1127 = vmatprep.subr.bf16.mxu0 0
        %1128 = vmatpush1.bf16.xpose.msra.mxu0 0
        %1129 = vmatprep.subr.bf16.mxu0 0
        %1130 = vmatpush1.bf16.xpose.msra.mxu0 0
        %1131 = vmatprep.subr.bf16.mxu0 0
        %1132 = vmatpush1.bf16.xpose.msra.mxu0 0
        %1133 = vmatprep.subr.bf16.mxu0 0
        %1134 = vmatpush1.bf16.xpose.msra.mxu0 0
        %1135 = vmatprep.subr.bf16.mxu0 0
        %1136 = vmatpush1.bf16.xpose.msra.mxu0 0
        %1137 = vmatprep.mubr.bf16.mxu0 0
        %1138 = vmatmul.mubr.bf16.gmra.mrb[0].mxu0 %v1100
        %v1139 = vpop.f32.mrb[0].mxu0
        %v1140 = vadd.f32 0.0, %v1139
        %v1141 = vpop.f32.mrb[0].mxu0
        %v1142 = vpop.f32.mrb[0].mxu0
        %v1143 = vpop.f32.mrb[0].mxu0
        %1144 = vdwg.mxu0
        %v1145 = vsel %vm960, %v1002, -inf
        %1146 = vmax.xlane.f32.xlu0 %v1145
        %v1147 = vpop.xlane.xlu0 %1146
        %v1148 = vsel %vm960, %v1048, -inf
        %1149 = vmax.xlane.f32.xlu0 %v1148
        %v1150 = vpop.xlane.xlu0 %1149
        %v1151 = vsel %vm960, %v1094, -inf
        %1152 = vmax.xlane.f32.xlu0 %v1151
        %v1153 = vpop.xlane.xlu0 %1152
        %v1154 = vsel %vm960, %v1140, -inf
        %1155 = vmax.xlane.f32.xlu0 %v1154
        %v1156 = vpop.xlane.xlu0 %1155
        %v1157 = vsub.f32 %v1002, %v1147
        %v1158 = vsub.f32 %v1048, %v1150
        %v1159 = vsub.f32 %v1094, %v1153
        %v1160 = vsub.f32 %v1140, %v1156
        %v1161 = vmul.f32 %v1157, 1.442695
        %v1162 = vpow.pop %v1161
        %v1163 = vmul.f32 %v1158, 1.442695
        %v1164 = vpow.pop %v1163
        %v1165 = vmul.f32 %v1159, 1.442695
        %v1166 = vpow.pop %v1165
        %v1167 = vmul.f32 %v1160, 1.442695
        %v1168 = vpow.pop %v1167
        %v1169 = vsel %vm960, %v1162, 0.0
        %1170 = vadd.xlane.f32.xlu0 %v1169
        %v1171 = vpop.xlane.xlu0 %1170
        %v1172 = vsel %vm960, %v1164, 0.0
        %1173 = vadd.xlane.f32.xlu0 %v1172
        %v1174 = vpop.xlane.xlu0 %1173
        %v1175 = vsel %vm960, %v1166, 0.0
        %1176 = vadd.xlane.f32.xlu0 %v1175
        %v1177 = vpop.xlane.xlu0 %1176
        %v1178 = vsel %vm960, %v1168, 0.0
        %1179 = vadd.xlane.f32.xlu0 %v1178
        %v1180 = vpop.xlane.xlu0 %1179
        %v1181 = vrcp.pop %v1171
        %v1182 = vrcp.pop %v1174
        %v1183 = vrcp.pop %v1177
        %v1184 = vrcp.pop %v1180
        %v1185 = vmul.f32 %v1162, %v1181
        %v1186 = vmul.f32 %v1164, %v1182
        %v1187 = vmul.f32 %v1166, %v1183
        %v1188 = vmul.f32 %v1168, %v1184
        %v1189 = vpack.c.bf16 %v1185, %v1185
        %v1190 = vpack.c.bf16 %v1186, %v1186
        %v1191 = vpack.c.bf16 %v1187, %v1187
        %v1192 = vpack.c.bf16 %v1188, %v1188
        %v1194 = vsel %vm960, %v1189, 0
        %vm1196 = vcmask 1043456
        %v1198 = vsel %vm1196, %v956, 0
        %1200 = vmatprep.subr.bf16.mxu0 0
        %1201 = vmatpush1.bf16.msra.mxu0 %v1198
        %1202 = vmatprep.subr.bf16.mxu0 0
        %1203 = vmatpush1.bf16.msra.mxu0 0
        %1204 = vmatprep.subr.bf16.mxu0 0
        %1205 = vmatpush1.bf16.msra.mxu0 0
        %1206 = vmatprep.subr.bf16.mxu0 0
        %1207 = vmatpush1.bf16.msra.mxu0 0
        %1208 = vmatprep.subr.bf16.mxu0 0
        %1209 = vmatpush1.bf16.msra.mxu0 0
        %1210 = vmatprep.subr.bf16.mxu0 0
        %1211 = vmatpush1.bf16.msra.mxu0 0
        %1212 = vmatprep.subr.bf16.mxu0 0
        %1213 = vmatpush1.bf16.msra.mxu0 0
        %1214 = vmatprep.subr.bf16.mxu0 0
        %1215 = vmatpush1.bf16.msra.mxu0 0
        %1216 = vmatprep.subr.bf16.mxu0 0
        %1217 = vmatpush1.bf16.msra.mxu0 0
        %1218 = vmatprep.subr.bf16.mxu0 0
        %1219 = vmatpush1.bf16.msra.mxu0 0
        %1220 = vmatprep.subr.bf16.mxu0 0
        %1221 = vmatpush1.bf16.msra.mxu0 0
        %1222 = vmatprep.subr.bf16.mxu0 0
        %1223 = vmatpush1.bf16.msra.mxu0 0
        %1224 = vmatprep.subr.bf16.mxu0 0
        %1225 = vmatpush1.bf16.msra.mxu0 0
        %1226 = vmatprep.subr.bf16.mxu0 0
        %1227 = vmatpush1.bf16.msra.mxu0 0
        %1228 = vmatprep.subr.bf16.mxu0 0
        %1229 = vmatpush1.bf16.msra.mxu0 0
        %1230 = vmatprep.subr.bf16.mxu0 0
        %1231 = vmatpush1.bf16.msra.mxu0 0
        %1232 = vmatprep.mubr.bf16.mxu0 0
        %1233 = vmatmul.mubr.bf16.gmra.mrb[0].mxu0 %v1194
        %v1234 = vpop.f32.mrb[0].mxu0
        %v1235 = vadd.f32 0.0, %v1234
        %v1236 = vpop.f32.mrb[0].mxu0
        %v1237 = vpop.f32.mrb[0].mxu0
        %v1238 = vpop.f32.mrb[0].mxu0
        %1239 = vdwg.mxu0
        %v1241 = vsel %vm960, %v1190, 0
        %v1244 = vsel %vm1196, %v957, 0
        %1246 = vmatprep.subr.bf16.mxu0 0
        %1247 = vmatpush1.bf16.msra.mxu0 %v1244
        %1248 = vmatprep.subr.bf16.mxu0 0
        %1249 = vmatpush1.bf16.msra.mxu0 0
        %1250 = vmatprep.subr.bf16.mxu0 0
        %1251 = vmatpush1.bf16.msra.mxu0 0
        %1252 = vmatprep.subr.bf16.mxu0 0
        %1253 = vmatpush1.bf16.msra.mxu0 0
        %1254 = vmatprep.subr.bf16.mxu0 0
        %1255 = vmatpush1.bf16.msra.mxu0 0
        %1256 = vmatprep.subr.bf16.mxu0 0
        %1257 = vmatpush1.bf16.msra.mxu0 0
        %1258 = vmatprep.subr.bf16.mxu0 0
        %1259 = vmatpush1.bf16.msra.mxu0 0
        %1260 = vmatprep.subr.bf16.mxu0 0
        %1261 = vmatpush1.bf16.msra.mxu0 0
        %1262 = vmatprep.subr.bf16.mxu0 0
        %1263 = vmatpush1.bf16.msra.mxu0 0
        %1264 = vmatprep.subr.bf16.mxu0 0
        %1265 = vmatpush1.bf16.msra.mxu0 0
        %1266 = vmatprep.subr.bf16.mxu0 0
        %1267 = vmatpush1.bf16.msra.mxu0 0
        %1268 = vmatprep.subr.bf16.mxu0 0
        %1269 = vmatpush1.bf16.msra.mxu0 0
        %1270 = vmatprep.subr.bf16.mxu0 0
        %1271 = vmatpush1.bf16.msra.mxu0 0
        %1272 = vmatprep.subr.bf16.mxu0 0
        %1273 = vmatpush1.bf16.msra.mxu0 0
        %1274 = vmatprep.subr.bf16.mxu0 0
        %1275 = vmatpush1.bf16.msra.mxu0 0
        %1276 = vmatprep.subr.bf16.mxu0 0
        %1277 = vmatpush1.bf16.msra.mxu0 0
        %1278 = vmatprep.mubr.bf16.mxu0 0
        %1279 = vmatmul.mubr.bf16.gmra.mrb[0].mxu0 %v1241
        %v1280 = vpop.f32.mrb[0].mxu0
        %v1281 = vadd.f32 0.0, %v1280
        %v1282 = vpop.f32.mrb[0].mxu0
        %v1283 = vpop.f32.mrb[0].mxu0
        %v1284 = vpop.f32.mrb[0].mxu0
        %1285 = vdwg.mxu0
        %v1287 = vsel %vm960, %v1191, 0
        %v1290 = vsel %vm1196, %v958, 0
        %1292 = vmatprep.subr.bf16.mxu0 0
        %1293 = vmatpush1.bf16.msra.mxu0 %v1290
        %1294 = vmatprep.subr.bf16.mxu0 0
        %1295 = vmatpush1.bf16.msra.mxu0 0
        %1296 = vmatprep.subr.bf16.mxu0 0
        %1297 = vmatpush1.bf16.msra.mxu0 0
        %1298 = vmatprep.subr.bf16.mxu0 0
        %1299 = vmatpush1.bf16.msra.mxu0 0
        %1300 = vmatprep.subr.bf16.mxu0 0
        %1301 = vmatpush1.bf16.msra.mxu0 0
        %1302 = vmatprep.subr.bf16.mxu0 0
        %1303 = vmatpush1.bf16.msra.mxu0 0
        %1304 = vmatprep.subr.bf16.mxu0 0
        %1305 = vmatpush1.bf16.msra.mxu0 0
        %1306 = vmatprep.subr.bf16.mxu0 0
        %1307 = vmatpush1.bf16.msra.mxu0 0
        %1308 = vmatprep.subr.bf16.mxu0 0
        %1309 = vmatpush1.bf16.msra.mxu0 0
        %1310 = vmatprep.subr.bf16.mxu0 0
        %1311 = vmatpush1.bf16.msra.mxu0 0
        %1312 = vmatprep.subr.bf16.mxu0 0
        %1313 = vmatpush1.bf16.msra.mxu0 0
        %1314 = vmatprep.subr.bf16.mxu0 0
        %1315 = vmatpush1.bf16.msra.mxu0 0
        %1316 = vmatprep.subr.bf16.mxu0 0
        %1317 = vmatpush1.bf16.msra.mxu0 0
        %1318 = vmatprep.subr.bf16.mxu0 0
        %1319 = vmatpush1.bf16.msra.mxu0 0
        %1320 = vmatprep.subr.bf16.mxu0 0
        %1321 = vmatpush1.bf16.msra.mxu0 0
        %1322 = vmatprep.subr.bf16.mxu0 0
        %1323 = vmatpush1.bf16.msra.mxu0 0
        %1324 = vmatprep.mubr.bf16.mxu0 0
        %1325 = vmatmul.mubr.bf16.gmra.mrb[0].mxu0 %v1287
        %v1326 = vpop.f32.mrb[0].mxu0
        %v1327 = vadd.f32 0.0, %v1326
        %v1328 = vpop.f32.mrb[0].mxu0
        %v1329 = vpop.f32.mrb[0].mxu0
        %v1330 = vpop.f32.mrb[0].mxu0
        %1331 = vdwg.mxu0
        %v1333 = vsel %vm960, %v1192, 0
        %v1336 = vsel %vm1196, %v959, 0
        %1338 = vmatprep.subr.bf16.mxu0 0
        %1339 = vmatpush1.bf16.msra.mxu0 %v1336
        %1340 = vmatprep.subr.bf16.mxu0 0
        %1341 = vmatpush1.bf16.msra.mxu0 0
        %1342 = vmatprep.subr.bf16.mxu0 0
        %1343 = vmatpush1.bf16.msra.mxu0 0
        %1344 = vmatprep.subr.bf16.mxu0 0
        %1345 = vmatpush1.bf16.msra.mxu0 0
        %1346 = vmatprep.subr.bf16.mxu0 0
        %1347 = vmatpush1.bf16.msra.mxu0 0
        %1348 = vmatprep.subr.bf16.mxu0 0
        %1349 = vmatpush1.bf16.msra.mxu0 0
        %1350 = vmatprep.subr.bf16.mxu0 0
        %1351 = vmatpush1.bf16.msra.mxu0 0
        %1352 = vmatprep.subr.bf16.mxu0 0
        %1353 = vmatpush1.bf16.msra.mxu0 0
        %1354 = vmatprep.subr.bf16.mxu0 0
        %1355 = vmatpush1.bf16.msra.mxu0 0
        %1356 = vmatprep.subr.bf16.mxu0 0
        %1357 = vmatpush1.bf16.msra.mxu0 0
        %1358 = vmatprep.subr.bf16.mxu0 0
        %1359 = vmatpush1.bf16.msra.mxu0 0
        %1360 = vmatprep.subr.bf16.mxu0 0
        %1361 = vmatpush1.bf16.msra.mxu0 0
        %1362 = vmatprep.subr.bf16.mxu0 0
        %1363 = vmatpush1.bf16.msra.mxu0 0
        %1364 = vmatprep.subr.bf16.mxu0 0
        %1365 = vmatpush1.bf16.msra.mxu0 0
        %1366 = vmatprep.subr.bf16.mxu0 0
        %1367 = vmatpush1.bf16.msra.mxu0 0
        %1368 = vmatprep.subr.bf16.mxu0 0
        %1369 = vmatpush1.bf16.msra.mxu0 0
        %1370 = vmatprep.mubr.bf16.mxu0 0
        %1371 = vmatmul.mubr.bf16.gmra.mrb[0].mxu0 %v1333
        %v1372 = vpop.f32.mrb[0].mxu0
        %v1373 = vadd.f32 0.0, %v1372
        %v1374 = vpop.f32.mrb[0].mxu0
        %v1375 = vpop.f32.mrb[0].mxu0
        %v1376 = vpop.f32.mrb[0].mxu0
        %1377 = vdwg.mxu0
        %v1378 = vcombine.low %v1235, %v1327
        %v1379 = vcombine.high %v1235, %v1327
        %v1381 = vunpack.c.l.s4 1983009808
        %v1382 = vunpack.c.0.s8 %v1381
        %v1383 = vlaneseq
        %v1384 = vshrl.u32 %v1383, 7
        %v1385 = vsub.s32 %v1382, %v1384
        %v1386 = vrot.slane %v1378, %v1385
        %v1388 = vunpack.c.l.s4 1983009808
        %v1389 = vunpack.c.0.s8 %v1388
        %v1390 = vlaneseq
        %v1391 = vshrl.u32 %v1390, 7
        %v1392 = vsub.s32 %v1389, %v1391
        %v1393 = vrot.slane %v1379, %v1392
        %v1394 = vcombine.low %v1281, %v1373
        %v1395 = vcombine.high %v1281, %v1373
        %v1397 = vunpack.c.l.s4 1983009808
        %v1398 = vunpack.c.0.s8 %v1397
        %v1399 = vlaneseq
        %v1400 = vshrl.u32 %v1399, 7
        %v1401 = vsub.s32 %v1398, %v1400
        %v1402 = vrot.slane %v1394, %v1401
        %v1404 = vunpack.c.l.s4 1983009808
        %v1405 = vunpack.c.0.s8 %v1404
        %v1406 = vlaneseq
        %v1407 = vshrl.u32 %v1406, 7
        %v1408 = vsub.s32 %v1405, %v1407
        %v1409 = vrot.slane %v1395, %v1408
        %v1410 = vcombine.low %v1386, %v1402
        %v1411 = vcombine.high %v1386, %v1402
        %v1413 = vunpack.c.l.s4 1934713408
        %v1414 = vunpack.c.0.s8 %v1413
        %v1415 = vlaneseq
        %v1416 = vshrl.u32 %v1415, 7
        %v1417 = vsub.s32 %v1414, %v1416
        %v1418 = vrot.slane %v1410, %v1417
        %v1420 = vunpack.c.l.s4 1934713408
        %v1421 = vunpack.c.0.s8 %v1420
        %v1422 = vlaneseq
        %v1423 = vshrl.u32 %v1422, 7
        %v1424 = vsub.s32 %v1421, %v1423
        %v1425 = vrot.slane %v1411, %v1424
        %v1426 = vcombine.low %v1393, %v1409
        %v1427 = vcombine.high %v1393, %v1409
        %v1429 = vunpack.c.l.s4 1934713408
        %v1430 = vunpack.c.0.s8 %v1429
        %v1431 = vlaneseq
        %v1432 = vshrl.u32 %v1431, 7
        %v1433 = vsub.s32 %v1430, %v1432
        %v1434 = vrot.slane %v1426, %v1433
        %v1436 = vunpack.c.l.s4 1934713408
        %v1437 = vunpack.c.0.s8 %v1436
        %v1438 = vlaneseq
        %v1439 = vshrl.u32 %v1438, 7
        %v1440 = vsub.s32 %v1437, %v1439
        %v1441 = vrot.slane %v1427, %v1440
        %v1442 = vcombine.high %v1418, 0.0
        %v1443 = vcombine.high %v1425, 0.0
        %v1444 = vcombine.high %v1434, 0.0
        %v1445 = vcombine.high %v1441, 0.0
        %v1446 = vcombine.low %v1418, %v1425
        %v1448 = vunpack.c.l.s4 1983009808
        %v1449 = vunpack.c.0.s8 %v1448
        %v1450 = vlaneseq
        %v1451 = vshrl.u32 %v1450, 7
        %v1452 = vsub.s32 %v1449, %v1451
        %v1453 = vrot.slane %v1446, %v1452
        %v1454 = vcombine.low %v1442, %v1443
        %v1456 = vunpack.c.l.s4 1983009808
        %v1457 = vunpack.c.0.s8 %v1456
        %v1458 = vlaneseq
        %v1459 = vshrl.u32 %v1458, 7
        %v1460 = vsub.s32 %v1457, %v1459
        %v1461 = vrot.slane %v1454, %v1460
        %v1462 = vcombine.low %v1434, %v1441
        %v1464 = vunpack.c.l.s4 1983009808
        %v1465 = vunpack.c.0.s8 %v1464
        %v1466 = vlaneseq
        %v1467 = vshrl.u32 %v1466, 7
        %v1468 = vsub.s32 %v1465, %v1467
        %v1469 = vrot.slane %v1462, %v1468
        %v1470 = vcombine.low %v1444, %v1445
        %v1472 = vunpack.c.l.s4 1983009808
        %v1473 = vunpack.c.0.s8 %v1472
        %v1474 = vlaneseq
        %v1475 = vshrl.u32 %v1474, 7
        %v1476 = vsub.s32 %v1473, %v1475
        %v1477 = vrot.slane %v1470, %v1476
        %v1478 = vcombine.low %v1453, %v1461
        %v1479 = vcombine.high %v1453, %v1461
        %v1481 = vunpack.c.l.s4 1934713408
        %v1482 = vunpack.c.0.s8 %v1481
        %v1483 = vlaneseq
        %v1484 = vshrl.u32 %v1483, 7
        %v1485 = vsub.s32 %v1482, %v1484
        %v1486 = vrot.slane %v1478, %v1485
        %v1488 = vunpack.c.l.s4 1934713408
        %v1489 = vunpack.c.0.s8 %v1488
        %v1490 = vlaneseq
        %v1491 = vshrl.u32 %v1490, 7
        %v1492 = vsub.s32 %v1489, %v1491
        %v1493 = vrot.slane %v1479, %v1492
        %v1494 = vcombine.low %v1469, %v1477
        %v1495 = vcombine.high %v1469, %v1477
        %v1497 = vunpack.c.l.s4 1934713408
        %v1498 = vunpack.c.0.s8 %v1497
        %v1499 = vlaneseq
        %v1500 = vshrl.u32 %v1499, 7
        %v1501 = vsub.s32 %v1498, %v1500
        %v1502 = vrot.slane %v1494, %v1501
        %v1504 = vunpack.c.l.s4 1934713408
        %v1505 = vunpack.c.0.s8 %v1504
        %v1506 = vlaneseq
        %v1507 = vshrl.u32 %v1506, 7
        %v1508 = vsub.s32 %v1505, %v1507
        %v1509 = vrot.slane %v1495, %v1508
        %v1510 = vcombine.low %v1486, %v1502
        %v1511 = vcombine.high %v1486, %v1502
        %v1512 = vcombine.low %v1493, %v1509
        %v1513 = vcombine.high %v1493, %v1509
        %1515 = vrot.lane.b32.xlu0 %v1511, 8
        %v1516 = vpop.permute.xlu0 %1515
        %1519 = vrot.lane.b32.xlu0 %v1512, 16
        %v1520 = vpop.permute.xlu0 %1519
        %1523 = vrot.lane.b32.xlu0 %v1513, 24
        %v1524 = vpop.permute.xlu0 %1523
        %v1526 = vsel %vm960, %v1510, %v1516
        %vm1527 = vcmask 130048
        %v1528 = vsel %vm1527, %v1526, %v1520
        %vm1529 = vcmask 195584
        %v1530 = vsel %vm1529, %v1528, %v1524
        %v1531 = vpack.c.bf16 %v1530, %v1530
        %v1532 = vld [vmem:[%s3] sm:$0xf]
        %v1533 = vld [vmem:[%s3 + $0x4] sm:$0xf]
        %v1534 = vld [vmem:[%s3 + $0x8] sm:$0xf]
        %v1535 = vld [vmem:[%s3 + $0xc] sm:$0xf]
        %v1536 = vld [vmem:[%s4] sm:$0x1]
        %v1538 = vlaneseq
        %v1539 = vshrl.u32 %v1538, 7
        %v1540 = vsub.s32 0, %v1539
        %v1541 = vrot.slane %v1536, %v1540
        %v1547 = vunpack.c.l.b16 %v1532
        %v1548 = vunpack.c.l.b16 %v1533
        %v1549 = vunpack.c.l.b16 %v1534
        %v1550 = vunpack.c.l.b16 %v1535
        %v1551 = vpack.c.b16 %v1548, %v1547
        %v1552 = vpack.c.b16 %v1550, %v1549
        %v1556 = vsel %vm462, %v1531, 0
        %1558 = vmatprep.subr.bf16.mxu0 0
        %1559 = vmatpush1.bf16.msra.mxu0 %v1551
        %1560 = vmatprep.subr.bf16.mxu0 0
        %1561 = vmatpush1.bf16.msra.mxu0 %v1552
        %1562 = vmatprep.subr.bf16.mxu0 0
        %1563 = vmatpush1.bf16.msra.mxu0 0
        %1564 = vmatprep.subr.bf16.mxu0 0
        %1565 = vmatpush1.bf16.msra.mxu0 0
        %1566 = vmatprep.subr.bf16.mxu0 0
        %1567 = vmatpush1.bf16.msra.mxu0 0
        %1568 = vmatprep.subr.bf16.mxu0 0
        %1569 = vmatpush1.bf16.msra.mxu0 0
        %1570 = vmatprep.subr.bf16.mxu0 0
        %1571 = vmatpush1.bf16.msra.mxu0 0
        %1572 = vmatprep.subr.bf16.mxu0 0
        %1573 = vmatpush1.bf16.msra.mxu0 0
        %1574 = vmatprep.subr.bf16.mxu0 0
        %1575 = vmatpush1.bf16.msra.mxu0 0
        %1576 = vmatprep.subr.bf16.mxu0 0
        %1577 = vmatpush1.bf16.msra.mxu0 0
        %1578 = vmatprep.subr.bf16.mxu0 0
        %1579 = vmatpush1.bf16.msra.mxu0 0
        %1580 = vmatprep.subr.bf16.mxu0 0
        %1581 = vmatpush1.bf16.msra.mxu0 0
        %1582 = vmatprep.subr.bf16.mxu0 0
        %1583 = vmatpush1.bf16.msra.mxu0 0
        %1584 = vmatprep.subr.bf16.mxu0 0
        %1585 = vmatpush1.bf16.msra.mxu0 0
        %1586 = vmatprep.subr.bf16.mxu0 0
        %1587 = vmatpush1.bf16.msra.mxu0 0
        %1588 = vmatprep.subr.bf16.mxu0 0
        %1589 = vmatpush1.bf16.msra.mxu0 0
        %1590 = vmatprep.mubr.bf16.mxu0 0
        %1591 = vmatmul.mubr.bf16.gmra.mrb[0].mxu0 %v1556
        %v1592 = vpop.f32.mrb[0].mxu0
        %v1593 = vadd.f32 %v1541, %v1592
        %v1594 = vpop.f32.mrb[0].mxu0
        %v1595 = vpop.f32.mrb[0].mxu0
        %v1596 = vpop.f32.mrb[0].mxu0
        %1597 = vdwg.mxu0
        %v1598 = vadd.f32 %v437, %v1593
        %v1599 = vld [vmem:[%s5] sm:$0x1]
        %v1600 = vld [vmem:[%s6] sm:$0x1]
        %v1601 = vsel %vm462, %v1598, 0.0
        %1602 = vadd.xlane.f32.xlu0 %v1601
        %v1603 = vpop.xlane.xlu0 %1602
        %v1604 = vrcp.pop 32.0
        %v1605 = vmul.f32 %v1603, %v1604
        %v1606 = vsub.f32 %v1598, %v1605
        %v1607 = vmul.f32 %v1606, %v1606
        %v1608 = vsel %vm462, %v1607, 0.0
        %1609 = vadd.xlane.f32.xlu0 %v1608
        %v1610 = vpop.xlane.xlu0 %1609
        %v1611 = vmul.f32 %v1610, %v1604
        %v1612 = vadd.f32 %v1611, 1e-05
        %v1613 = vrsqrt.pop %v1612
        %v1614 = vmul.f32 %v1606, %v1613
        %v1616 = vlaneseq
        %v1617 = vshrl.u32 %v1616, 7
        %v1618 = vsub.s32 0, %v1617
        %v1619 = vrot.slane %v1599, %v1618
        %v1621 = vmul.f32 %v1614, %v1619
        %v1623 = vlaneseq
        %v1624 = vshrl.u32 %v1623, 7
        %v1625 = vsub.s32 0, %v1624
        %v1626 = vrot.slane %v1600, %v1625
        %v1628 = vadd.f32 %v1621, %v1626
        %v1629 = vpack.c.bf16 %v1628, %v1628
        %v1630 = vld [vmem:[%s7] sm:$0xf]
        %v1631 = vld [vmem:[%s7 + $0x4] sm:$0xf]
        %v1632 = vld [vmem:[%s7 + $0x8] sm:$0xf]
        %v1633 = vld [vmem:[%s7 + $0xc] sm:$0xf]
        %v1634 = vld [vmem:[%s8] sm:$0x1]
        %v1636 = vlaneseq
        %v1637 = vshrl.u32 %v1636, 7
        %v1638 = vsub.s32 0, %v1637
        %v1639 = vrot.slane %v1634, %v1638
        %v1645 = vunpack.c.l.b16 %v1630
        %v1646 = vunpack.c.l.b16 %v1631
        %v1647 = vunpack.c.l.b16 %v1632
        %v1648 = vunpack.c.l.b16 %v1633
        %v1649 = vpack.c.b16 %v1646, %v1645
        %v1650 = vpack.c.b16 %v1648, %v1647
        %v1654 = vsel %vm462, %v1629, 0
        %1656 = vmatprep.subr.bf16.mxu0 0
        %1657 = vmatpush1.bf16.msra.mxu0 %v1649
        %1658 = vmatprep.subr.bf16.mxu0 0
        %1659 = vmatpush1.bf16.msra.mxu0 %v1650
        %1660 = vmatprep.subr.bf16.mxu0 0
        %1661 = vmatpush1.bf16.msra.mxu0 0
        %1662 = vmatprep.subr.bf16.mxu0 0
        %1663 = vmatpush1.bf16.msra.mxu0 0
        %1664 = vmatprep.subr.bf16.mxu0 0
        %1665 = vmatpush1.bf16.msra.mxu0 0
        %1666 = vmatprep.subr.bf16.mxu0 0
        %1667 = vmatpush1.bf16.msra.mxu0 0
        %1668 = vmatprep.subr.bf16.mxu0 0
        %1669 = vmatpush1.bf16.msra.mxu0 0
        %1670 = vmatprep.subr.bf16.mxu0 0
        %1671 = vmatpush1.bf16.msra.mxu0 0
        %1672 = vmatprep.subr.bf16.mxu0 0
        %1673 = vmatpush1.bf16.msra.mxu0 0
        %1674 = vmatprep.subr.bf16.mxu0 0
        %1675 = vmatpush1.bf16.msra.mxu0 0
        %1676 = vmatprep.subr.bf16.mxu0 0
        %1677 = vmatpush1.bf16.msra.mxu0 0
        %1678 = vmatprep.subr.bf16.mxu0 0
        %1679 = vmatpush1.bf16.msra.mxu0 0
        %1680 = vmatprep.subr.bf16.mxu0 0
        %1681 = vmatpush1.bf16.msra.mxu0 0
        %1682 = vmatprep.subr.bf16.mxu0 0
        %1683 = vmatpush1.bf16.msra.mxu0 0
        %1684 = vmatprep.subr.bf16.mxu0 0
        %1685 = vmatpush1.bf16.msra.mxu0 0
        %1686 = vmatprep.subr.bf16.mxu0 0
        %1687 = vmatpush1.bf16.msra.mxu0 0
        %1688 = vmatprep.mubr.bf16.mxu0 0
        %1689 = vmatmul.mubr.bf16.gmra.mrb[0].mxu0 %v1654
        %v1690 = vpop.f32.mrb[0].mxu0
        %v1691 = vadd.f32 %v1639, %v1690
        %v1692 = vpop.f32.mrb[0].mxu0
        %v1693 = vpop.f32.mrb[0].mxu0
        %v1694 = vpop.f32.mrb[0].mxu0
        %1695 = vdwg.mxu0
        %v1696 = vmax.f32 %v1691, 0.0
        %v1697 = vpack.c.bf16 %v1696, %v1696
        %v1698 = vld [vmem:[%s9] sm:$0xf]
        %v1699 = vld [vmem:[%s9 + $0x4] sm:$0xf]
        %v1700 = vld [vmem:[%s9 + $0x8] sm:$0xf]
        %v1701 = vld [vmem:[%s9 + $0xc] sm:$0xf]
        %v1702 = vld [vmem:[%s9 + $0x10] sm:$0xf]
        %v1703 = vld [vmem:[%s9 + $0x14] sm:$0xf]
        %v1704 = vld [vmem:[%s9 + $0x18] sm:$0xf]
        %v1705 = vld [vmem:[%s9 + $0x1c] sm:$0xf]
        %v1706 = vld [vmem:[%s9 + $0x20] sm:$0xf]
        %v1707 = vld [vmem:[%s9 + $0x24] sm:$0xf]
        %v1708 = vld [vmem:[%s9 + $0x28] sm:$0xf]
        %v1709 = vld [vmem:[%s9 + $0x2c] sm:$0xf]
        %v1710 = vld [vmem:[%s9 + $0x30] sm:$0xf]
        %v1711 = vld [vmem:[%s9 + $0x34] sm:$0xf]
        %v1712 = vld [vmem:[%s9 + $0x38] sm:$0xf]
        %v1713 = vld [vmem:[%s9 + $0x3c] sm:$0xf]
        %v1714 = vld [vmem:[%s10] sm:$0x1]
        %v1716 = vlaneseq
        %v1717 = vshrl.u32 %v1716, 7
        %v1718 = vsub.s32 0, %v1717
        %v1719 = vrot.slane %v1714, %v1718
        %v1737 = vunpack.c.l.b16 %v1698
        %v1738 = vunpack.c.l.b16 %v1699
        %v1739 = vunpack.c.l.b16 %v1700
        %v1740 = vunpack.c.l.b16 %v1701
        %v1741 = vunpack.c.l.b16 %v1702
        %v1742 = vunpack.c.l.b16 %v1703
        %v1743 = vunpack.c.l.b16 %v1704
        %v1744 = vunpack.c.l.b16 %v1705
        %v1745 = vunpack.c.l.b16 %v1706
        %v1746 = vunpack.c.l.b16 %v1707
        %v1747 = vunpack.c.l.b16 %v1708
        %v1748 = vunpack.c.l.b16 %v1709
        %v1749 = vunpack.c.l.b16 %v1710
        %v1750 = vunpack.c.l.b16 %v1711
        %v1751 = vunpack.c.l.b16 %v1712
        %v1752 = vunpack.c.l.b16 %v1713
        %v1753 = vpack.c.b16 %v1738, %v1737
        %v1754 = vpack.c.b16 %v1740, %v1739
        %v1755 = vpack.c.b16 %v1742, %v1741
        %v1756 = vpack.c.b16 %v1744, %v1743
        %v1757 = vpack.c.b16 %v1746, %v1745
        %v1758 = vpack.c.b16 %v1748, %v1747
        %v1759 = vpack.c.b16 %v1750, %v1749
        %v1760 = vpack.c.b16 %v1752, %v1751
        %1769 = vmatprep.subr.bf16.mxu0 0
        %1770 = vmatpush1.bf16.msra.mxu0 %v1753
        %1771 = vmatprep.subr.bf16.mxu0 0
        %1772 = vmatpush1.bf16.msra.mxu0 %v1754
        %1773 = vmatprep.subr.bf16.mxu0 0
        %1774 = vmatpush1.bf16.msra.mxu0 %v1755
        %1775 = vmatprep.subr.bf16.mxu0 0
        %1776 = vmatpush1.bf16.msra.mxu0 %v1756
        %1777 = vmatprep.subr.bf16.mxu0 0
        %1778 = vmatpush1.bf16.msra.mxu0 %v1757
        %1779 = vmatprep.subr.bf16.mxu0 0
        %1780 = vmatpush1.bf16.msra.mxu0 %v1758
        %1781 = vmatprep.subr.bf16.mxu0 0
        %1782 = vmatpush1.bf16.msra.mxu0 %v1759
        %1783 = vmatprep.subr.bf16.mxu0 0
        %1784 = vmatpush1.bf16.msra.mxu0 %v1760
        %1785 = vmatprep.subr.bf16.mxu0 0
        %1786 = vmatpush1.bf16.msra.mxu0 0
        %1787 = vmatprep.subr.bf16.mxu0 0
        %1788 = vmatpush1.bf16.msra.mxu0 0
        %1789 = vmatprep.subr.bf16.mxu0 0
        %1790 = vmatpush1.bf16.msra.mxu0 0
        %1791 = vmatprep.subr.bf16.mxu0 0
        %1792 = vmatpush1.bf16.msra.mxu0 0
        %1793 = vmatprep.subr.bf16.mxu0 0
        %1794 = vmatpush1.bf16.msra.mxu0 0
        %1795 = vmatprep.subr.bf16.mxu0 0
        %1796 = vmatpush1.bf16.msra.mxu0 0
        %1797 = vmatprep.subr.bf16.mxu0 0
        %1798 = vmatpush1.bf16.msra.mxu0 0
        %1799 = vmatprep.subr.bf16.mxu0 0
        %1800 = vmatpush1.bf16.msra.mxu0 0
        %1801 = vmatprep.mubr.bf16.mxu0 0
        %1802 = vmatmul.mubr.bf16.gmra.mrb[0].mxu0 %v1697
        %v1803 = vpop.f32.mrb[0].mxu0
        %v1804 = vadd.f32 %v1719, %v1803
        %v1805 = vpop.f32.mrb[0].mxu0
        %v1806 = vpop.f32.mrb[0].mxu0
        %v1807 = vpop.f32.mrb[0].mxu0
        %1808 = vdwg.mxu0
        %v1809 = vadd.f32 %v1628, %v1804
        %v1810 = vld [vmem:[%s11] sm:$0x1]
        %v1811 = vld [vmem:[%s12] sm:$0x1]
        %v1812 = vsel %vm462, %v1809, 0.0
        %1813 = vadd.xlane.f32.xlu0 %v1812
        %v1814 = vpop.xlane.xlu0 %1813
        %v1815 = vmul.f32 %v1814, %v1604
        %v1816 = vsub.f32 %v1809, %v1815
        %v1817 = vmul.f32 %v1816, %v1816
        %v1818 = vsel %vm462, %v1817, 0.0
        %1819 = vadd.xlane.f32.xlu0 %v1818
        %v1820 = vpop.xlane.xlu0 %1819
        %v1821 = vmul.f32 %v1820, %v1604
        %v1822 = vadd.f32 %v1821, 1e-05
        %v1823 = vrsqrt.pop %v1822
        %v1824 = vmul.f32 %v1816, %v1823
        %v1826 = vlaneseq
        %v1827 = vshrl.u32 %v1826, 7
        %v1828 = vsub.s32 0, %v1827
        %v1829 = vrot.slane %v1810, %v1828
        %v1831 = vmul.f32 %v1824, %v1829
        %v1833 = vlaneseq
        %v1834 = vshrl.u32 %v1833, 7
        %v1835 = vsub.s32 0, %v1834
        %v1836 = vrot.slane %v1811, %v1835
        %v1838 = vadd.f32 %v1831, %v1836
        %1839 = vst.msk [vmem:[%s431] sm:$0xff] %vm462, %v1838
        %s1840 = sand.u32 %s313, 1
        %s1841 = scalar_lea.sflag [#allocation3], %s1840
        %s1842 = sand.u32 %s313, 1
        %s1843 = smul.addr %s1842, 8
        %s1844 = scalar_lea.vmem [#allocation2], %s1843
        // Predicated region
        $region73: #{tpu_custom_call.1} parent=71 // pred_check
          %p1845 = pneg %p323
        $region74: #{tpu_custom_call.1} parent=71 // pred_check_branch
          %1847 = sbr.rel (%p1845) target = $region76
        $region75: #{tpu_custom_call.1} parent=71 // pred_region
          %s1849 = ssub.s32 128, 128
          %1850 = vsyncadd %s1841, %s1849
          %s1851 = smul.addr %s27, 128
          %s1852 = scalar_lea.hbm %s13, %s1851
          %s1854 = sshll.u32 %s1844, 4
          %s1855 = int_to_ptr.vmem [resolvable:$true] %s1854
          %1857 = dma.vmem_to_hbm [thread:$0]  %s1855, 128, %s1852, %s1841
        $region76: #{tpu_custom_call.1} parent=71 // pred_fallthru
          _
      $region72: #{tpu_custom_call.1} parent=5 // pred_fallthru
        _
      %p1858 = scmp.le.s32.totalorder 2, %s22
      // Predicated region
      $region77: #{tpu_custom_call.1} parent=5 // pred_check
        %p1859 = pneg %p1858
      $region78: #{tpu_custom_call.1} parent=5 // pred_check_branch
        %1861 = sbr.rel (%p1859) target = $region80
      $region79: #{tpu_custom_call.1} parent=5 // pred_region
        %s1862 = ssub.s32 %s22, 2
        // Predicated region
        $region81: #{tpu_custom_call.1} parent=79 // pred_check
          %p1863 = pneg %p329
        $region82: #{tpu_custom_call.1} parent=79 // pred_check_branch
          %1865 = sbr.rel (%p1863) target = $region84
        $region83: #{tpu_custom_call.1} parent=79 // pred_region
          %s1866 = sand.u32 %s314, 1
          %s1867 = scalar_lea.sflag [#allocation3], %s1866
          %s1868 = sand.u32 %s314, 1
          %s1869 = smul.addr %s1868, 8
          %s1870 = scalar_lea.vmem [#allocation2], %s1869
          %1871 = dma.done %s1867, 128
        $region84: #{tpu_custom_call.1} parent=79 // pred_fallthru
          _
      $region80: #{tpu_custom_call.1} parent=5 // pred_fallthru
        _
    $region6: #{tpu_custom_call.1} parent=1 // loop_footer
      %s26 = sadd.s32 1, %s22
    $region7: #{tpu_custom_call.1} parent=1 // loop_footer_branch
      %21 = sbr.rel target = $region3
    $region8: #{tpu_custom_call.1} parent=1 // loop_exit
      _
    %1872 = vsyncpa [#allocation3], 1
    %s1873 = scalar_lea.sflag [#allocation3], 1
    %1874 = vsyncpa %s1873, 1

</llo_original>
